<compile_context>
chip_gen: v7x
topology: tpu7x:2x2x1
jax: 0.10.0
libtpu: 0.0.40
codegen_flags: <defaults>
</compile_context>

<pallas_src>
import jax
import jax.numpy as jnp
from jax.experimental import pallas as pl
from jax.experimental.pallas import tpu as pltpu

_LANE = 128
_SUBLANE = 8


def _round_up(n, m):
    return (n + m - 1) // m * m


def _mlp_kernel(x_ref,
                w1_ref, b1_ref,
                w2_ref, b2_ref,
                w3_ref, b3_ref,
                w4_ref, b4_ref,
                out_ref):
    # fc1 + ReLU  (bf16 operands, f32 accumulate on the MXU, f32 elementwise)
    h = jnp.dot(x_ref[...], w1_ref[...], preferred_element_type=jnp.float32)
    h = jnp.maximum(h + b1_ref[...], 0.0).astype(jnp.bfloat16)
    # fc2 + ReLU
    h = jnp.dot(h, w2_ref[...], preferred_element_type=jnp.float32)
    h = jnp.maximum(h + b2_ref[...], 0.0).astype(jnp.bfloat16)
    # fc3 + ReLU
    h = jnp.dot(h, w3_ref[...], preferred_element_type=jnp.float32)
    h = jnp.maximum(h + b3_ref[...], 0.0).astype(jnp.bfloat16)
    # fused heads: [sex | date | zero pad] -> one lane-dense 128-wide output
    out = jnp.dot(h, w4_ref[...], preferred_element_type=jnp.float32) + b4_ref[...]
    out_ref[...] = out.astype(out_ref.dtype)


def mono_task_nn_snd(x, kernel_params, num_sex_classes, num_date_classes):
    """Forward pass. x: (batch, input_size) f32. Returns (sex_logits, date_logits)."""
    w1, b1, w2, b2, w3, b3, w4, b4 = kernel_params
    batch, in_features = x.shape
    in_pad = w1.shape[0]          # lane-padded input width (multiple of 128)
    head_pad = w4.shape[1]        # lane-padded fused head width (128)

    # Batch tile: multiple of 8 sublanes, capped at 256 (MXU-friendly M).
    tb = min(256, _round_up(batch, _SUBLANE))
    padded_batch = _round_up(batch, tb)

    x = x.astype(jnp.bfloat16)    # halve the x HBM->VMEM DMA
    if padded_batch != batch or in_pad != in_features:
        x = jnp.pad(x, ((0, padded_batch - batch), (0, in_pad - in_features)))

    grid = (padded_batch // tb,)

    def const_spec(a):  # weights/biases: same block every grid step (VMEM-resident)
        return pl.BlockSpec(a.shape, lambda i: (0,) * a.ndim,
                            memory_space=pltpu.VMEM)

    in_specs = [
        pl.BlockSpec((tb, in_pad), lambda i: (i, 0), memory_space=pltpu.VMEM),
        const_spec(w1), const_spec(b1),
        const_spec(w2), const_spec(b2),
        const_spec(w3), const_spec(b3),
        const_spec(w4), const_spec(b4),
    ]
    out_spec = pl.BlockSpec((tb, head_pad), lambda i: (i, 0),
                            memory_space=pltpu.VMEM)

    out = pl.pallas_call(
        _mlp_kernel,
        grid=grid,
        in_specs=in_specs,
        out_specs=out_spec,
        out_shape=jax.ShapeDtypeStruct((padded_batch, head_pad), jnp.float32),
        compiler_params=pltpu.CompilerParams(
            dimension_semantics=("parallel",),   # shard batch tiles over TCs on v7x
            vmem_limit_bytes=16 << 20,
        ),
    )(x, w1, b1, w2, b2, w3, b3, w4, b4)

    sex = out[:batch, :num_sex_classes]
    date = out[:batch, num_sex_classes:num_sex_classes + num_date_classes]
    return sex, date


def init_params(key, input_size, num_sex_classes, num_date_classes):
    """f32 params matching PyTorch Linear init U(-1/sqrt(fan_in), 1/sqrt(fan_in)).
    Weights are (in, out) (already transposed vs. torch); biases are (1, out)."""
    dims = [
        (input_size, 1024),       # fc1_author_sex
        (1024, 512),              # fc2_author_sex
        (512, 128),               # fc3_author_sex
        (128, num_sex_classes),   # fc4_author_sex
        (128, num_date_classes),  # fc4_publication_year
    ]
    params = []
    for (fan_in, fan_out) in dims:
        key, kw, kb = jax.random.split(key, 3)
        bound = 1.0 / jnp.sqrt(float(fan_in))
        w = jax.random.uniform(kw, (fan_in, fan_out), jnp.float32, -bound, bound)
        b = jax.random.uniform(kb, (1, fan_out), jnp.float32, -bound, bound)
        params += [w, b]
    return tuple(params)


def prepare_kernel_params(params, num_sex_classes, num_date_classes):
    """Cast weights to bf16, lane-pad the input dim of w1, and fuse + lane-pad
    the two heads.  Biases stay in f32 (added on the f32 accumulator)."""
    (w1, b1, w2, b2, w3, b3, w4s, b4s, w4d, b4d) = params

    # Pad w1's input rows to a multiple of 128 (matching zero-padded x lanes).
    in_features = w1.shape[0]
    in_pad = _round_up(in_features, _LANE)
    if in_pad != in_features:
        w1 = jnp.pad(w1, ((0, in_pad - in_features), (0, 0)))

    # Fuse the two heads into one lane-dense, zero-padded (128, 128) weight.
    n_heads = num_sex_classes + num_date_classes
    head_pad = _round_up(n_heads, _LANE)
    w4 = jnp.zeros((w4s.shape[0], head_pad), jnp.float32)
    w4 = w4.at[:, :num_sex_classes].set(w4s)
    w4 = w4.at[:, num_sex_classes:n_heads].set(w4d)
    b4 = jnp.zeros((1, head_pad), jnp.float32)
    b4 = b4.at[:, :num_sex_classes].set(b4s)
    b4 = b4.at[:, num_sex_classes:n_heads].set(b4d)

    cast = lambda w: w.astype(jnp.bfloat16)
    return (cast(w1), b1, cast(w2), b2, cast(w3), b3, cast(w4), b4)


def reference_forward_bf16(x, kernel_params, num_sex_classes, num_date_classes):
    """Plain-JAX reference with identical bf16/f32 math to the kernel."""
    w1, b1, w2, b2, w3, b3, w4, b4 = kernel_params
    in_pad = w1.shape[0]
    h = x.astype(jnp.bfloat16)
    if in_pad != h.shape[1]:
        h = jnp.pad(h, ((0, 0), (0, in_pad - h.shape[1])))
    h = jnp.maximum(jnp.dot(h, w1, preferred_element_type=jnp.float32) + b1, 0.0)
    h = jnp.maximum(jnp.dot(h.astype(jnp.bfloat16), w2,
                            preferred_element_type=jnp.float32) + b2, 0.0)
    h = jnp.maximum(jnp.dot(h.astype(jnp.bfloat16), w3,
                            preferred_element_type=jnp.float32) + b3, 0.0)
    out = jnp.dot(h.astype(jnp.bfloat16), w4,
                  preferred_element_type=jnp.float32) + b4
    n = num_sex_classes
    return out[:, :n], out[:, n:n + num_date_classes]


def reference_forward_f32(x, params):
    """Full-precision reference (semantic sanity check of the fused/padded heads)."""
    (w1, b1, w2, b2, w3, b3, w4s, b4s, w4d, b4d) = params
    h = jnp.maximum(x @ w1 + b1, 0.0)
    h = jnp.maximum(h @ w2 + b2, 0.0)
    h = jnp.maximum(h @ w3 + b3, 0.0)
    return h @ w4s + b4s, h @ w4d + b4d


if __name__ == "__main__":
    batch = 8
    input_size = 256
    num_sex_classes = 2
    num_date_classes = 16

    key = jax.random.PRNGKey(0)
    key, kx = jax.random.split(key)
    x = jax.random.normal(kx, (batch, input_size), jnp.float32)

    params = init_params(key, input_size, num_sex_classes, num_date_classes)
    kparams = prepare_kernel_params(params, num_sex_classes, num_date_classes)

    sex_out, date_out = mono_task_nn_snd(x, kparams, num_sex_classes, num_date_classes)
    jax.block_until_ready((sex_out, date_out))

    assert sex_out.shape == (batch, num_sex_classes)
    assert date_out.shape == (batch, num_date_classes)

    # Tight check against the bf16-matching JAX reference.
    ref_sex_bf, ref_date_bf = reference_forward_bf16(
        x, kparams, num_sex_classes, num_date_classes)
    assert jnp.allclose(sex_out, ref_sex_bf, atol=1e-2, rtol=1e-2)
    assert jnp.allclose(date_out, ref_date_bf, atol=1e-2, rtol=1e-2)

    # Loose check against the original f32 math (bf16 weights -> relaxed tolerance).
    ref_sex_f32, ref_date_f32 = reference_forward_f32(x, params)
    assert jnp.allclose(sex_out, ref_sex_f32, atol=1e-1, rtol=1e-1)
    assert jnp.allclose(date_out, ref_date_f32, atol=1e-1, rtol=1e-1)

    print("KERNEL_OK")
</pallas_src>

<mosaic_0001>
module attributes {stable_mosaic.version = 11 : i64} {
  func.func @_mlp_kernel(%arg0: i32, %arg1: memref<8x256xbf16, #tpu.memory_space<vmem>>, %arg2: memref<256x1024xbf16, #tpu.memory_space<vmem>>, %arg3: memref<1x1024xf32, #tpu.memory_space<vmem>>, %arg4: memref<1024x512xbf16, #tpu.memory_space<vmem>>, %arg5: memref<1x512xf32, #tpu.memory_space<vmem>>, %arg6: memref<512x128xbf16, #tpu.memory_space<vmem>>, %arg7: memref<1x128xf32, #tpu.memory_space<vmem>>, %arg8: memref<128x128xbf16, #tpu.memory_space<vmem>>, %arg9: memref<1x128xf32, #tpu.memory_space<vmem>>, %arg10: memref<8x128xf32, #tpu.memory_space<vmem>>) attributes {dimension_semantics = [#tpu.dimension_semantics<parallel>], iteration_bounds = array<i64: 1>, scalar_prefetch = 0 : i64, scratch_operands = 0 : i64, tpu.core_type = #tpu.core_type<tc>, window_params = [{transform_indices = @transform_0, window_bounds = array<i64: 8, 256>}, {pipeline_mode = #tpu.pipeline_mode<synchronous>, transform_indices = @transform_1, window_bounds = array<i64: 256, 1024>}, {pipeline_mode = #tpu.pipeline_mode<synchronous>, transform_indices = @transform_2, window_bounds = array<i64: 1, 1024>}, {pipeline_mode = #tpu.pipeline_mode<synchronous>, transform_indices = @transform_3, window_bounds = array<i64: 1024, 512>}, {pipeline_mode = #tpu.pipeline_mode<synchronous>, transform_indices = @transform_4, window_bounds = array<i64: 1, 512>}, {pipeline_mode = #tpu.pipeline_mode<synchronous>, transform_indices = @transform_5, window_bounds = array<i64: 512, 128>}, {pipeline_mode = #tpu.pipeline_mode<synchronous>, transform_indices = @transform_6, window_bounds = array<i64: 1, 128>}, {pipeline_mode = #tpu.pipeline_mode<synchronous>, transform_indices = @transform_7, window_bounds = array<i64: 128, 128>}, {pipeline_mode = #tpu.pipeline_mode<synchronous>, transform_indices = @transform_8, window_bounds = array<i64: 1, 128>}, {transform_indices = @transform_9, window_bounds = array<i64: 8, 128>}]} {
    %c0 = arith.constant 0 : index
    %c0_0 = arith.constant 0 : index
    %0 = vector.load %arg1[%c0, %c0_0] : memref<8x256xbf16, #tpu.memory_space<vmem>>, vector<8x256xbf16>
    %c0_1 = arith.constant 0 : index
    %c0_2 = arith.constant 0 : index
    %1 = vector.load %arg2[%c0_1, %c0_2] : memref<256x1024xbf16, #tpu.memory_space<vmem>>, vector<256x1024xbf16>
    %cst = arith.constant dense<0.000000e+00> : vector<8x1024xf32>
    %2 = tpu.matmul %0, %1, %cst {dimension_numbers = #tpu.dot_dimension_numbers<[1], [0], [0], [1], [0, 0, 1, 1], [], []>} : vector<8x256xbf16>, vector<256x1024xbf16>, vector<8x1024xf32> -> vector<8x1024xf32>
    %c0_3 = arith.constant 0 : index
    %c0_4 = arith.constant 0 : index
    %3 = vector.load %arg3[%c0_3, %c0_4] : memref<1x1024xf32, #tpu.memory_space<vmem>>, vector<1x1024xf32>
    %4 = vector.broadcast %3 : vector<1x1024xf32> to vector<8x1024xf32>
    %5 = arith.addf %2, %4 : vector<8x1024xf32>
    %cst_5 = arith.constant 0.000000e+00 : f32
    %6 = vector.broadcast %cst_5 : f32 to vector<8x1024xf32>
    %7 = arith.maximumf %5, %6 : vector<8x1024xf32>
    %8 = arith.truncf %7 : vector<8x1024xf32> to vector<8x1024xbf16>
    %c0_6 = arith.constant 0 : index
    %c0_7 = arith.constant 0 : index
    %9 = vector.load %arg4[%c0_6, %c0_7] : memref<1024x512xbf16, #tpu.memory_space<vmem>>, vector<1024x512xbf16>
    %cst_8 = arith.constant dense<0.000000e+00> : vector<8x512xf32>
    %10 = tpu.matmul %8, %9, %cst_8 {dimension_numbers = #tpu.dot_dimension_numbers<[1], [0], [0], [1], [0, 0, 1, 1], [], []>} : vector<8x1024xbf16>, vector<1024x512xbf16>, vector<8x512xf32> -> vector<8x512xf32>
    %c0_9 = arith.constant 0 : index
    %c0_10 = arith.constant 0 : index
    %11 = vector.load %arg5[%c0_9, %c0_10] : memref<1x512xf32, #tpu.memory_space<vmem>>, vector<1x512xf32>
    %12 = vector.broadcast %11 : vector<1x512xf32> to vector<8x512xf32>
    %13 = arith.addf %10, %12 : vector<8x512xf32>
    %cst_11 = arith.constant 0.000000e+00 : f32
    %14 = vector.broadcast %cst_11 : f32 to vector<8x512xf32>
    %15 = arith.maximumf %13, %14 : vector<8x512xf32>
    %16 = arith.truncf %15 : vector<8x512xf32> to vector<8x512xbf16>
    %c0_12 = arith.constant 0 : index
    %c0_13 = arith.constant 0 : index
    %17 = vector.load %arg6[%c0_12, %c0_13] : memref<512x128xbf16, #tpu.memory_space<vmem>>, vector<512x128xbf16>
    %cst_14 = arith.constant dense<0.000000e+00> : vector<8x128xf32>
    %18 = tpu.matmul %16, %17, %cst_14 {dimension_numbers = #tpu.dot_dimension_numbers<[1], [0], [0], [1], [0, 0, 1, 1], [], []>} : vector<8x512xbf16>, vector<512x128xbf16>, vector<8x128xf32> -> vector<8x128xf32>
    %c0_15 = arith.constant 0 : index
    %c0_16 = arith.constant 0 : index
    %19 = vector.load %arg7[%c0_15, %c0_16] : memref<1x128xf32, #tpu.memory_space<vmem>>, vector<1x128xf32>
    %20 = vector.broadcast %19 : vector<1x128xf32> to vector<8x128xf32>
    %21 = arith.addf %18, %20 : vector<8x128xf32>
    %cst_17 = arith.constant 0.000000e+00 : f32
    %22 = vector.broadcast %cst_17 : f32 to vector<8x128xf32>
    %23 = arith.maximumf %21, %22 : vector<8x128xf32>
    %24 = arith.truncf %23 : vector<8x128xf32> to vector<8x128xbf16>
    %c0_18 = arith.constant 0 : index
    %c0_19 = arith.constant 0 : index
    %25 = vector.load %arg8[%c0_18, %c0_19] : memref<128x128xbf16, #tpu.memory_space<vmem>>, vector<128x128xbf16>
    %cst_20 = arith.constant dense<0.000000e+00> : vector<8x128xf32>
    %26 = tpu.matmul %24, %25, %cst_20 {dimension_numbers = #tpu.dot_dimension_numbers<[1], [0], [0], [1], [0, 0, 1, 1], [], []>} : vector<8x128xbf16>, vector<128x128xbf16>, vector<8x128xf32> -> vector<8x128xf32>
    %c0_21 = arith.constant 0 : index
    %c0_22 = arith.constant 0 : index
    %27 = vector.load %arg9[%c0_21, %c0_22] : memref<1x128xf32, #tpu.memory_space<vmem>>, vector<1x128xf32>
    %28 = vector.broadcast %27 : vector<1x128xf32> to vector<8x128xf32>
    %29 = arith.addf %26, %28 : vector<8x128xf32>
    %c0_23 = arith.constant 0 : index
    %c0_24 = arith.constant 0 : index
    %30 = vector.load %arg10[%c0_23, %c0_24] : memref<8x128xf32, #tpu.memory_space<vmem>>, vector<8x128xf32>
    tpu.vector_store %arg10[%c0_23, %c0_24], %29 {strides = array<i32>} : memref<8x128xf32, #tpu.memory_space<vmem>>, vector<8x128xf32>,
    return
  }
  func.func @transform_0(%arg0: i32) -> (i32, i32) {
    %c0_i32 = arith.constant 0 : i32
    %c0_i32_0 = arith.constant 0 : i32
    return %arg0, %c0_i32 : i32, i32
  }
  func.func @transform_1(%arg0: i32) -> (i32, i32) {
    %c0_i32 = arith.constant 0 : i32
    %c0_i32_0 = arith.constant 0 : i32
    %c0_i32_1 = arith.constant 0 : i32
    return %c0_i32, %c0_i32_0 : i32, i32
  }
  func.func @transform_2(%arg0: i32) -> (i32, i32) {
    %c0_i32 = arith.constant 0 : i32
    %c0_i32_0 = arith.constant 0 : i32
    %c0_i32_1 = arith.constant 0 : i32
    return %c0_i32, %c0_i32_0 : i32, i32
  }
  func.func @transform_3(%arg0: i32) -> (i32, i32) {
    %c0_i32 = arith.constant 0 : i32
    %c0_i32_0 = arith.constant 0 : i32
    %c0_i32_1 = arith.constant 0 : i32
    return %c0_i32, %c0_i32_0 : i32, i32
  }
  func.func @transform_4(%arg0: i32) -> (i32, i32) {
    %c0_i32 = arith.constant 0 : i32
    %c0_i32_0 = arith.constant 0 : i32
    %c0_i32_1 = arith.constant 0 : i32
    return %c0_i32, %c0_i32_0 : i32, i32
  }
  func.func @transform_5(%arg0: i32) -> (i32, i32) {
    %c0_i32 = arith.constant 0 : i32
    %c0_i32_0 = arith.constant 0 : i32
    %c0_i32_1 = arith.constant 0 : i32
    return %c0_i32, %c0_i32_0 : i32, i32
  }
  func.func @transform_6(%arg0: i32) -> (i32, i32) {
    %c0_i32 = arith.constant 0 : i32
    %c0_i32_0 = arith.constant 0 : i32
    %c0_i32_1 = arith.constant 0 : i32
    return %c0_i32, %c0_i32_0 : i32, i32
  }
  func.func @transform_7(%arg0: i32) -> (i32, i32) {
    %c0_i32 = arith.constant 0 : i32
    %c0_i32_0 = arith.constant 0 : i32
    %c0_i32_1 = arith.constant 0 : i32
    return %c0_i32, %c0_i32_0 : i32, i32
  }
  func.func @transform_8(%arg0: i32) -> (i32, i32) {
    %c0_i32 = arith.constant 0 : i32
    %c0_i32_0 = arith.constant 0 : i32
    %c0_i32_1 = arith.constant 0 : i32
    return %c0_i32, %c0_i32_0 : i32, i32
  }
  func.func @transform_9(%arg0: i32) -> (i32, i32) {
    %c0_i32 = arith.constant 0 : i32
    %c0_i32_0 = arith.constant 0 : i32
    return %arg0, %c0_i32 : i32, i32
  }
}

</mosaic_0001>

<llo_original>
// kernel: tpu_custom_call.1
$region0: #{tpu_custom_call.1}
  #allocation0 [shape = 'u32[]', space=smem, size = 0x4, offset = 0x4, fixed_abs, tag = 'smem constant byte address 0x4 - core index']
  #allocation1 [shape = 'u32[144,128]{1,0:T(1,128)}', space=vmem, size = 0x12000, scoped, tag = 'internal scratch']
  %s0 = inlined_call_operand.hbm [shape: bf16[8,256], index: 0, kind: input, shape index: {}]
  %s1 = inlined_call_operand.hbm [shape: bf16[256,1024], index: 1, kind: input, shape index: {}]
  %s2 = inlined_call_operand.hbm [shape: f32[1,1024], index: 2, kind: input, shape index: {}]
  %s3 = inlined_call_operand.hbm [shape: bf16[1024,512], index: 3, kind: input, shape index: {}]
  %s4 = inlined_call_operand.vmem [shape: f32[1,512], index: 4, kind: input, shape index: {}]
  %s5 = inlined_call_operand.hbm [shape: bf16[512,128], index: 5, kind: input, shape index: {}]
  %s6 = inlined_call_operand.vmem [shape: f32[1,128], index: 6, kind: input, shape index: {}]
  %s7 = inlined_call_operand.hbm [shape: bf16[128,128], index: 7, kind: input, shape index: {}]
  %s8 = inlined_call_operand.vmem [shape: f32[1,128], index: 8, kind: input, shape index: {}]
  %s9 = inlined_call_operand.hbm [shape: f32[8,128], index: 9, kind: output, shape index: {}]
  %s10 = sld [smem:[#allocation0]]
  $region70: #{tpu_custom_call.1} parent=0
    _
  %s12 = ssub.s32 1, %s10
  %s13 = scalar_select 0, %s12, %s10
  $region1: #{tpu_custom_call.1} parent=0
    #allocation2 [shape = 'u8[4096]{0}', space=vmem, size = 0x1000, scoped, tag = 'input window, operand 0, single buffered']
    #allocation3 [shape = 's32[1]{0}', space=sflag, size = 0x4, scoped, tag = 'scoped memory for tpu_custom_call.1']
    #allocation4 [shape = 's32[1]{0}', space=sflag, size = 0x4, scoped, tag = 'scoped memory for tpu_custom_call.1']
    #allocation5 [shape = 'u8[524288]{0}', space=vmem, size = 0x80000, scoped, tag = 'input window, operand 1, single buffered']
    #allocation6 [shape = 's32[1]{0}', space=sflag, size = 0x4, scoped, tag = 'scoped memory for tpu_custom_call.1']
    #allocation7 [shape = 'u8[4096]{0}', space=vmem, size = 0x1000, scoped, tag = 'input window, operand 2, single buffered']
    #allocation8 [shape = 'u8[1048576]{0}', space=vmem, size = 0x100000, scoped, tag = 'input window, operand 3, single buffered']
    #allocation9 [shape = 's32[1]{0}', space=sflag, size = 0x4, scoped, tag = 'scoped memory for tpu_custom_call.1']
    #allocation10 [shape = 'u8[131072]{0}', space=vmem, size = 0x20000, scoped, tag = 'input window, operand 5, single buffered']
    #allocation11 [shape = 'u8[32768]{0}', space=vmem, size = 0x8000, scoped, tag = 'input window, operand 7, single buffered']
    #allocation12 [shape = 's32[1]{0}', space=sflag, size = 0x4, scoped, tag = 'scoped memory for tpu_custom_call.1']
    #allocation13 [shape = 'u8[4096]{0}', space=vmem, size = 0x1000, scoped, tag = 'output window, operand 0, single buffered']
    %14 = vsyncpa [#allocation3], 0
    %15 = vsyncpa [#allocation6], 0
    %16 = vsyncpa [#allocation9], 0
    %17 = vsyncpa [#allocation12], 0
    %18 = vsyncpa [#allocation4], 0
    // Predicated region
    $region2: #{tpu_custom_call.1} parent=1 // pred_check
      _
    $region3: #{tpu_custom_call.1} parent=1 // pred_check_branch
      %20 = sbr.rel (0) target = $region5
    $region4: #{tpu_custom_call.1} parent=1 // pred_region
      %s22 = ssub.s32 128, 128
      %23 = vsyncadd [#allocation3], %s22
      %s25 = sshll.u32 [#allocation2], 4
      %s26 = int_to_ptr.vmem [resolvable:$true] %s25
      %28 = dma.hbm_to_vmem [thread:$0]  %s0, 128, %s26, [#allocation3]
    $region5: #{tpu_custom_call.1} parent=1 // pred_fallthru
      _
    // Predicated region
    $region6: #{tpu_custom_call.1} parent=1 // pred_check
      _
    $region7: #{tpu_custom_call.1} parent=1 // pred_check_branch
      %30 = sbr.rel (0) target = $region9
    $region8: #{tpu_custom_call.1} parent=1 // pred_region
      %s32 = ssub.s32 16384, 16384
      %33 = vsyncadd [#allocation6], %s32
      %s34 = sshll.u32 [#allocation5], 4
      %s35 = int_to_ptr.vmem [resolvable:$true] %s34
      %40 = dma.hbm_to_vmem [thread:$0]  %s1, 16384, %s35, [#allocation6], 512, 512, 32
    $region9: #{tpu_custom_call.1} parent=1 // pred_fallthru
      _
    // Predicated region
    $region10: #{tpu_custom_call.1} parent=1 // pred_check
      _
    $region11: #{tpu_custom_call.1} parent=1 // pred_check_branch
      %42 = sbr.rel (0) target = $region13
    $region12: #{tpu_custom_call.1} parent=1 // pred_region
      %s44 = ssub.s32 128, 128
      %45 = vsyncadd [#allocation6], %s44
      %s47 = sshll.u32 [#allocation7], 4
      %s48 = int_to_ptr.vmem [resolvable:$true] %s47
      %50 = dma.hbm_to_vmem [thread:$0]  %s2, 128, %s48, [#allocation6]
    $region13: #{tpu_custom_call.1} parent=1 // pred_fallthru
      _
    // Predicated region
    $region14: #{tpu_custom_call.1} parent=1 // pred_check
      _
    $region15: #{tpu_custom_call.1} parent=1 // pred_check_branch
      %52 = sbr.rel (0) target = $region17
    $region16: #{tpu_custom_call.1} parent=1 // pred_region
      %s54 = ssub.s32 32768, 32768
      %55 = vsyncadd [#allocation9], %s54
      %s56 = sshll.u32 [#allocation8], 4
      %s57 = int_to_ptr.vmem [resolvable:$true] %s56
      %62 = dma.hbm_to_vmem [thread:$0]  %s3, 32768, %s57, [#allocation9], 256, 256, 16
    $region17: #{tpu_custom_call.1} parent=1 // pred_fallthru
      _
    // Predicated region
    $region18: #{tpu_custom_call.1} parent=1 // pred_check
      _
    $region19: #{tpu_custom_call.1} parent=1 // pred_check_branch
      %64 = sbr.rel (0) target = $region21
    $region20: #{tpu_custom_call.1} parent=1 // pred_region
      _
    $region21: #{tpu_custom_call.1} parent=1 // pred_fallthru
      _
    // Predicated region
    $region22: #{tpu_custom_call.1} parent=1 // pred_check
      _
    $region23: #{tpu_custom_call.1} parent=1 // pred_check_branch
      %66 = sbr.rel (0) target = $region25
    $region24: #{tpu_custom_call.1} parent=1 // pred_region
      %s68 = ssub.s32 4096, 4096
      %69 = vsyncadd [#allocation9], %s68
      %s70 = sshll.u32 [#allocation10], 4
      %s71 = int_to_ptr.vmem [resolvable:$true] %s70
      %76 = dma.hbm_to_vmem [thread:$0]  %s5, 4096, %s71, [#allocation9], 64, 64, 4
    $region25: #{tpu_custom_call.1} parent=1 // pred_fallthru
      _
    // Predicated region
    $region26: #{tpu_custom_call.1} parent=1 // pred_check
      _
    $region27: #{tpu_custom_call.1} parent=1 // pred_check_branch
      %78 = sbr.rel (0) target = $region29
    $region28: #{tpu_custom_call.1} parent=1 // pred_region
      _
    $region29: #{tpu_custom_call.1} parent=1 // pred_fallthru
      _
    // Predicated region
    $region30: #{tpu_custom_call.1} parent=1 // pred_check
      _
    $region31: #{tpu_custom_call.1} parent=1 // pred_check_branch
      %80 = sbr.rel (0) target = $region33
    $region32: #{tpu_custom_call.1} parent=1 // pred_region
      %s82 = ssub.s32 1024, 1024
      %83 = vsyncadd [#allocation12], %s82
      %s84 = sshll.u32 [#allocation11], 4
      %s85 = int_to_ptr.vmem [resolvable:$true] %s84
      %90 = dma.hbm_to_vmem [thread:$0]  %s7, 1024, %s85, [#allocation12], 64, 64, 4
    $region33: #{tpu_custom_call.1} parent=1 // pred_fallthru
      _
    // Predicated region
    $region34: #{tpu_custom_call.1} parent=1 // pred_check
      _
    $region35: #{tpu_custom_call.1} parent=1 // pred_check_branch
      %92 = sbr.rel (0) target = $region37
    $region36: #{tpu_custom_call.1} parent=1 // pred_region
      _
    $region37: #{tpu_custom_call.1} parent=1 // pred_fallthru
      _
    // Predicated region
    $region38: #{tpu_custom_call.1} parent=1 // pred_check
      _
    $region39: #{tpu_custom_call.1} parent=1 // pred_check_branch
      %94 = sbr.rel (0) target = $region41
    $region40: #{tpu_custom_call.1} parent=1 // pred_region
      %95 = dma.done [#allocation3], 128
    $region41: #{tpu_custom_call.1} parent=1 // pred_fallthru
      _
    // Predicated region
    $region42: #{tpu_custom_call.1} parent=1 // pred_check
      _
    $region43: #{tpu_custom_call.1} parent=1 // pred_check_branch
      %97 = sbr.rel (0) target = $region45
    $region44: #{tpu_custom_call.1} parent=1 // pred_region
      %98 = dma.done [#allocation6], 16384
    $region45: #{tpu_custom_call.1} parent=1 // pred_fallthru
      _
    // Predicated region
    $region46: #{tpu_custom_call.1} parent=1 // pred_check
      _
    $region47: #{tpu_custom_call.1} parent=1 // pred_check_branch
      %100 = sbr.rel (0) target = $region49
    $region48: #{tpu_custom_call.1} parent=1 // pred_region
      %101 = dma.done [#allocation6], 128
    $region49: #{tpu_custom_call.1} parent=1 // pred_fallthru
      _
    // Predicated region
    $region50: #{tpu_custom_call.1} parent=1 // pred_check
      _
    $region51: #{tpu_custom_call.1} parent=1 // pred_check_branch
      %103 = sbr.rel (0) target = $region53
    $region52: #{tpu_custom_call.1} parent=1 // pred_region
      %104 = dma.done [#allocation9], 32768
    $region53: #{tpu_custom_call.1} parent=1 // pred_fallthru
      _
    // Predicated region
    $region54: #{tpu_custom_call.1} parent=1 // pred_check
      _
    $region55: #{tpu_custom_call.1} parent=1 // pred_check_branch
      %106 = sbr.rel (0) target = $region57
    $region56: #{tpu_custom_call.1} parent=1 // pred_region
      %107 = dma.done [#allocation9], 4096
    $region57: #{tpu_custom_call.1} parent=1 // pred_fallthru
      _
    // Predicated region
    $region58: #{tpu_custom_call.1} parent=1 // pred_check
      _
    $region59: #{tpu_custom_call.1} parent=1 // pred_check_branch
      %109 = sbr.rel (0) target = $region61
    $region60: #{tpu_custom_call.1} parent=1 // pred_region
      %110 = dma.done [#allocation12], 1024
    $region61: #{tpu_custom_call.1} parent=1 // pred_fallthru
      _
    %v112 = vld [vmem:[#allocation2] sm:$0xff]
    %v113 = vld [vmem:[#allocation5] sm:$0xff]
    %v114 = vld [vmem:[#allocation5 + $0x8] sm:$0xff]
    %v115 = vld [vmem:[#allocation5 + $0x10] sm:$0xff]
    %v116 = vld [vmem:[#allocation5 + $0x18] sm:$0xff]
    %v117 = vld [vmem:[#allocation5 + $0x20] sm:$0xff]
    %v118 = vld [vmem:[#allocation5 + $0x28] sm:$0xff]
    %v119 = vld [vmem:[#allocation5 + $0x30] sm:$0xff]
    %v120 = vld [vmem:[#allocation5 + $0x38] sm:$0xff]
    %v121 = vld [vmem:[#allocation5 + $0x40] sm:$0xff]
    %v122 = vld [vmem:[#allocation5 + $0x48] sm:$0xff]
    %v123 = vld [vmem:[#allocation5 + $0x50] sm:$0xff]
    %v124 = vld [vmem:[#allocation5 + $0x58] sm:$0xff]
    %v125 = vld [vmem:[#allocation5 + $0x60] sm:$0xff]
    %v126 = vld [vmem:[#allocation5 + $0x68] sm:$0xff]
    %v127 = vld [vmem:[#allocation5 + $0x70] sm:$0xff]
    %v128 = vld [vmem:[#allocation5 + $0x78] sm:$0xff]
    %v129 = vld [vmem:[#allocation5 + $0x80] sm:$0xff]
    %v130 = vld [vmem:[#allocation5 + $0x88] sm:$0xff]
    %v131 = vld [vmem:[#allocation5 + $0x90] sm:$0xff]
    %v132 = vld [vmem:[#allocation5 + $0x98] sm:$0xff]
    %v133 = vld [vmem:[#allocation5 + $0xa0] sm:$0xff]
    %v134 = vld [vmem:[#allocation5 + $0xa8] sm:$0xff]
    %v135 = vld [vmem:[#allocation5 + $0xb0] sm:$0xff]
    %v136 = vld [vmem:[#allocation5 + $0xb8] sm:$0xff]
    %v137 = vld [vmem:[#allocation5 + $0xc0] sm:$0xff]
    %v138 = vld [vmem:[#allocation5 + $0xc8] sm:$0xff]
    %v139 = vld [vmem:[#allocation5 + $0xd0] sm:$0xff]
    %v140 = vld [vmem:[#allocation5 + $0xd8] sm:$0xff]
    %v141 = vld [vmem:[#allocation5 + $0xe0] sm:$0xff]
    %v142 = vld [vmem:[#allocation5 + $0xe8] sm:$0xff]
    %v143 = vld [vmem:[#allocation5 + $0xf0] sm:$0xff]
    %v144 = vld [vmem:[#allocation5 + $0xf8] sm:$0xff]
    %v145 = vld [vmem:[#allocation5 + $0x100] sm:$0xff]
    %v146 = vld [vmem:[#allocation5 + $0x108] sm:$0xff]
    %v147 = vld [vmem:[#allocation5 + $0x110] sm:$0xff]
    %v148 = vld [vmem:[#allocation5 + $0x118] sm:$0xff]
    %v149 = vld [vmem:[#allocation5 + $0x120] sm:$0xff]
    %v150 = vld [vmem:[#allocation5 + $0x128] sm:$0xff]
    %v151 = vld [vmem:[#allocation5 + $0x130] sm:$0xff]
    %v152 = vld [vmem:[#allocation5 + $0x138] sm:$0xff]
    %v153 = vld [vmem:[#allocation5 + $0x140] sm:$0xff]
    %v154 = vld [vmem:[#allocation5 + $0x148] sm:$0xff]
    %v155 = vld [vmem:[#allocation5 + $0x150] sm:$0xff]
    %v156 = vld [vmem:[#allocation5 + $0x158] sm:$0xff]
    %v157 = vld [vmem:[#allocation5 + $0x160] sm:$0xff]
    %v158 = vld [vmem:[#allocation5 + $0x168] sm:$0xff]
    %v159 = vld [vmem:[#allocation5 + $0x170] sm:$0xff]
    %v160 = vld [vmem:[#allocation5 + $0x178] sm:$0xff]
    %v161 = vld [vmem:[#allocation5 + $0x180] sm:$0xff]
    %v162 = vld [vmem:[#allocation5 + $0x188] sm:$0xff]
    %v163 = vld [vmem:[#allocation5 + $0x190] sm:$0xff]
    %v164 = vld [vmem:[#allocation5 + $0x198] sm:$0xff]
    %v165 = vld [vmem:[#allocation5 + $0x1a0] sm:$0xff]
    %v166 = vld [vmem:[#allocation5 + $0x1a8] sm:$0xff]
    %v167 = vld [vmem:[#allocation5 + $0x1b0] sm:$0xff]
    %v168 = vld [vmem:[#allocation5 + $0x1b8] sm:$0xff]
    %v169 = vld [vmem:[#allocation5 + $0x1c0] sm:$0xff]
    %v170 = vld [vmem:[#allocation5 + $0x1c8] sm:$0xff]
    %v171 = vld [vmem:[#allocation5 + $0x1d0] sm:$0xff]
    %v172 = vld [vmem:[#allocation5 + $0x1d8] sm:$0xff]
    %v173 = vld [vmem:[#allocation5 + $0x1e0] sm:$0xff]
    %v174 = vld [vmem:[#allocation5 + $0x1e8] sm:$0xff]
    %v175 = vld [vmem:[#allocation5 + $0x1f0] sm:$0xff]
    %v176 = vld [vmem:[#allocation5 + $0x1f8] sm:$0xff]
    %v177 = vld [vmem:[#allocation5 + $0x200] sm:$0xff]
    %v178 = vld [vmem:[#allocation5 + $0x208] sm:$0xff]
    %v179 = vld [vmem:[#allocation5 + $0x210] sm:$0xff]
    %v180 = vld [vmem:[#allocation5 + $0x218] sm:$0xff]
    %v181 = vld [vmem:[#allocation5 + $0x220] sm:$0xff]
    %v182 = vld [vmem:[#allocation5 + $0x228] sm:$0xff]
    %v183 = vld [vmem:[#allocation5 + $0x230] sm:$0xff]
    %v184 = vld [vmem:[#allocation5 + $0x238] sm:$0xff]
    %v185 = vld [vmem:[#allocation5 + $0x240] sm:$0xff]
    %v186 = vld [vmem:[#allocation5 + $0x248] sm:$0xff]
    %v187 = vld [vmem:[#allocation5 + $0x250] sm:$0xff]
    %v188 = vld [vmem:[#allocation5 + $0x258] sm:$0xff]
    %v189 = vld [vmem:[#allocation5 + $0x260] sm:$0xff]
    %v190 = vld [vmem:[#allocation5 + $0x268] sm:$0xff]
    %v191 = vld [vmem:[#allocation5 + $0x270] sm:$0xff]
    %v192 = vld [vmem:[#allocation5 + $0x278] sm:$0xff]
    %v193 = vld [vmem:[#allocation5 + $0x280] sm:$0xff]
    %v194 = vld [vmem:[#allocation5 + $0x288] sm:$0xff]
    %v195 = vld [vmem:[#allocation5 + $0x290] sm:$0xff]
    %v196 = vld [vmem:[#allocation5 + $0x298] sm:$0xff]
    %v197 = vld [vmem:[#allocation5 + $0x2a0] sm:$0xff]
    %v198 = vld [vmem:[#allocation5 + $0x2a8] sm:$0xff]
    %v199 = vld [vmem:[#allocation5 + $0x2b0] sm:$0xff]
    %v200 = vld [vmem:[#allocation5 + $0x2b8] sm:$0xff]
    %v201 = vld [vmem:[#allocation5 + $0x2c0] sm:$0xff]
    %v202 = vld [vmem:[#allocation5 + $0x2c8] sm:$0xff]
    %v203 = vld [vmem:[#allocation5 + $0x2d0] sm:$0xff]
    %v204 = vld [vmem:[#allocation5 + $0x2d8] sm:$0xff]
    %v205 = vld [vmem:[#allocation5 + $0x2e0] sm:$0xff]
    %v206 = vld [vmem:[#allocation5 + $0x2e8] sm:$0xff]
    %v207 = vld [vmem:[#allocation5 + $0x2f0] sm:$0xff]
    %v208 = vld [vmem:[#allocation5 + $0x2f8] sm:$0xff]
    %v209 = vld [vmem:[#allocation5 + $0x300] sm:$0xff]
    %v210 = vld [vmem:[#allocation5 + $0x308] sm:$0xff]
    %v211 = vld [vmem:[#allocation5 + $0x310] sm:$0xff]
    %v212 = vld [vmem:[#allocation5 + $0x318] sm:$0xff]
    %v213 = vld [vmem:[#allocation5 + $0x320] sm:$0xff]
    %v214 = vld [vmem:[#allocation5 + $0x328] sm:$0xff]
    %v215 = vld [vmem:[#allocation5 + $0x330] sm:$0xff]
    %v216 = vld [vmem:[#allocation5 + $0x338] sm:$0xff]
    %v217 = vld [vmem:[#allocation5 + $0x340] sm:$0xff]
    %v218 = vld [vmem:[#allocation5 + $0x348] sm:$0xff]
    %v219 = vld [vmem:[#allocation5 + $0x350] sm:$0xff]
    %v220 = vld [vmem:[#allocation5 + $0x358] sm:$0xff]
    %v221 = vld [vmem:[#allocation5 + $0x360] sm:$0xff]
    %v222 = vld [vmem:[#allocation5 + $0x368] sm:$0xff]
    %v223 = vld [vmem:[#allocation5 + $0x370] sm:$0xff]
    %v224 = vld [vmem:[#allocation5 + $0x378] sm:$0xff]
    %v225 = vld [vmem:[#allocation5 + $0x380] sm:$0xff]
    %v226 = vld [vmem:[#allocation5 + $0x388] sm:$0xff]
    %v227 = vld [vmem:[#allocation5 + $0x390] sm:$0xff]
    %v228 = vld [vmem:[#allocation5 + $0x398] sm:$0xff]
    %v229 = vld [vmem:[#allocation5 + $0x3a0] sm:$0xff]
    %v230 = vld [vmem:[#allocation5 + $0x3a8] sm:$0xff]
    %v231 = vld [vmem:[#allocation5 + $0x3b0] sm:$0xff]
    %v232 = vld [vmem:[#allocation5 + $0x3b8] sm:$0xff]
    %v233 = vld [vmem:[#allocation5 + $0x3c0] sm:$0xff]
    %v234 = vld [vmem:[#allocation5 + $0x3c8] sm:$0xff]
    %v235 = vld [vmem:[#allocation5 + $0x3d0] sm:$0xff]
    %v236 = vld [vmem:[#allocation5 + $0x3d8] sm:$0xff]
    %v237 = vld [vmem:[#allocation5 + $0x3e0] sm:$0xff]
    %v238 = vld [vmem:[#allocation5 + $0x3e8] sm:$0xff]
    %v239 = vld [vmem:[#allocation5 + $0x3f0] sm:$0xff]
    %v240 = vld [vmem:[#allocation5 + $0x3f8] sm:$0xff]
    %v241 = vld [vmem:[#allocation7] sm:$0xff]
    %v243 = vlaneseq
    %v244 = vshrl.u32 %v243, 7
    %v245 = vsub.s32 0, %v244
    %v246 = vrot.slane %v241, %v245
    %v247 = vlaneseq
    %v248 = vshrl.u32 %v247, 7
    %v249 = vsub.s32 1, %v248
    %v250 = vrot.slane %v241, %v249
    %v251 = vlaneseq
    %v252 = vshrl.u32 %v251, 7
    %v253 = vsub.s32 2, %v252
    %v254 = vrot.slane %v241, %v253
    %v255 = vlaneseq
    %v256 = vshrl.u32 %v255, 7
    %v257 = vsub.s32 3, %v256
    %v258 = vrot.slane %v241, %v257
    %v259 = vlaneseq
    %v260 = vshrl.u32 %v259, 7
    %v261 = vsub.s32 4, %v260
    %v262 = vrot.slane %v241, %v261
    %v263 = vlaneseq
    %v264 = vshrl.u32 %v263, 7
    %v265 = vsub.s32 5, %v264
    %v266 = vrot.slane %v241, %v265
    %v267 = vlaneseq
    %v268 = vshrl.u32 %v267, 7
    %v269 = vsub.s32 6, %v268
    %v270 = vrot.slane %v241, %v269
    %v271 = vlaneseq
    %v272 = vshrl.u32 %v271, 7
    %v273 = vsub.s32 7, %v272
    %v274 = vrot.slane %v241, %v273
    %v284 = vunpack.c.l.b16 %v112
    %v285 = vunpack.c.h.b16 %v112
    %v286 = vpack.c.b16 %v284, %v284
    %v287 = vpack.c.b16 %v285, %v285
    %v418 = vunpack.c.l.b16 %v113
    %v419 = vunpack.c.h.b16 %v113
    %v420 = vunpack.c.l.b16 %v114
    %v421 = vunpack.c.h.b16 %v114
    %v422 = vunpack.c.l.b16 %v115
    %v423 = vunpack.c.h.b16 %v115
    %v424 = vunpack.c.l.b16 %v116
    %v425 = vunpack.c.h.b16 %v116
    %v426 = vunpack.c.l.b16 %v117
    %v427 = vunpack.c.h.b16 %v117
    %v428 = vunpack.c.l.b16 %v118
    %v429 = vunpack.c.h.b16 %v118
    %v430 = vunpack.c.l.b16 %v119
    %v431 = vunpack.c.h.b16 %v119
    %v432 = vunpack.c.l.b16 %v120
    %v433 = vunpack.c.h.b16 %v120
    %v434 = vunpack.c.l.b16 %v121
    %v435 = vunpack.c.h.b16 %v121
    %v436 = vunpack.c.l.b16 %v122
    %v437 = vunpack.c.h.b16 %v122
    %v438 = vunpack.c.l.b16 %v123
    %v439 = vunpack.c.h.b16 %v123
    %v440 = vunpack.c.l.b16 %v124
    %v441 = vunpack.c.h.b16 %v124
    %v442 = vunpack.c.l.b16 %v125
    %v443 = vunpack.c.h.b16 %v125
    %v444 = vunpack.c.l.b16 %v126
    %v445 = vunpack.c.h.b16 %v126
    %v446 = vunpack.c.l.b16 %v127
    %v447 = vunpack.c.h.b16 %v127
    %v448 = vunpack.c.l.b16 %v128
    %v449 = vunpack.c.h.b16 %v128
    %v450 = vunpack.c.l.b16 %v129
    %v451 = vunpack.c.h.b16 %v129
    %v452 = vunpack.c.l.b16 %v130
    %v453 = vunpack.c.h.b16 %v130
    %v454 = vunpack.c.l.b16 %v131
    %v455 = vunpack.c.h.b16 %v131
    %v456 = vunpack.c.l.b16 %v132
    %v457 = vunpack.c.h.b16 %v132
    %v458 = vunpack.c.l.b16 %v133
    %v459 = vunpack.c.h.b16 %v133
    %v460 = vunpack.c.l.b16 %v134
    %v461 = vunpack.c.h.b16 %v134
    %v462 = vunpack.c.l.b16 %v135
    %v463 = vunpack.c.h.b16 %v135
    %v464 = vunpack.c.l.b16 %v136
    %v465 = vunpack.c.h.b16 %v136
    %v466 = vunpack.c.l.b16 %v137
    %v467 = vunpack.c.h.b16 %v137
    %v468 = vunpack.c.l.b16 %v138
    %v469 = vunpack.c.h.b16 %v138
    %v470 = vunpack.c.l.b16 %v139
    %v471 = vunpack.c.h.b16 %v139
    %v472 = vunpack.c.l.b16 %v140
    %v473 = vunpack.c.h.b16 %v140
    %v474 = vunpack.c.l.b16 %v141
    %v475 = vunpack.c.h.b16 %v141
    %v476 = vunpack.c.l.b16 %v142
    %v477 = vunpack.c.h.b16 %v142
    %v478 = vunpack.c.l.b16 %v143
    %v479 = vunpack.c.h.b16 %v143
    %v480 = vunpack.c.l.b16 %v144
    %v481 = vunpack.c.h.b16 %v144
    %v482 = vunpack.c.l.b16 %v145
    %v483 = vunpack.c.h.b16 %v145
    %v484 = vunpack.c.l.b16 %v146
    %v485 = vunpack.c.h.b16 %v146
    %v486 = vunpack.c.l.b16 %v147
    %v487 = vunpack.c.h.b16 %v147
    %v488 = vunpack.c.l.b16 %v148
    %v489 = vunpack.c.h.b16 %v148
    %v490 = vunpack.c.l.b16 %v149
    %v491 = vunpack.c.h.b16 %v149
    %v492 = vunpack.c.l.b16 %v150
    %v493 = vunpack.c.h.b16 %v150
    %v494 = vunpack.c.l.b16 %v151
    %v495 = vunpack.c.h.b16 %v151
    %v496 = vunpack.c.l.b16 %v152
    %v497 = vunpack.c.h.b16 %v152
    %v498 = vunpack.c.l.b16 %v153
    %v499 = vunpack.c.h.b16 %v153
    %v500 = vunpack.c.l.b16 %v154
    %v501 = vunpack.c.h.b16 %v154
    %v502 = vunpack.c.l.b16 %v155
    %v503 = vunpack.c.h.b16 %v155
    %v504 = vunpack.c.l.b16 %v156
    %v505 = vunpack.c.h.b16 %v156
    %v506 = vunpack.c.l.b16 %v157
    %v507 = vunpack.c.h.b16 %v157
    %v508 = vunpack.c.l.b16 %v158
    %v509 = vunpack.c.h.b16 %v158
    %v510 = vunpack.c.l.b16 %v159
    %v511 = vunpack.c.h.b16 %v159
    %v512 = vunpack.c.l.b16 %v160
    %v513 = vunpack.c.h.b16 %v160
    %v514 = vunpack.c.l.b16 %v161
    %v515 = vunpack.c.h.b16 %v161
    %v516 = vunpack.c.l.b16 %v162
    %v517 = vunpack.c.h.b16 %v162
    %v518 = vunpack.c.l.b16 %v163
    %v519 = vunpack.c.h.b16 %v163
    %v520 = vunpack.c.l.b16 %v164
    %v521 = vunpack.c.h.b16 %v164
    %v522 = vunpack.c.l.b16 %v165
    %v523 = vunpack.c.h.b16 %v165
    %v524 = vunpack.c.l.b16 %v166
    %v525 = vunpack.c.h.b16 %v166
    %v526 = vunpack.c.l.b16 %v167
    %v527 = vunpack.c.h.b16 %v167
    %v528 = vunpack.c.l.b16 %v168
    %v529 = vunpack.c.h.b16 %v168
    %v530 = vunpack.c.l.b16 %v169
    %v531 = vunpack.c.h.b16 %v169
    %v532 = vunpack.c.l.b16 %v170
    %v533 = vunpack.c.h.b16 %v170
    %v534 = vunpack.c.l.b16 %v171
    %v535 = vunpack.c.h.b16 %v171
    %v536 = vunpack.c.l.b16 %v172
    %v537 = vunpack.c.h.b16 %v172
    %v538 = vunpack.c.l.b16 %v173
    %v539 = vunpack.c.h.b16 %v173
    %v540 = vunpack.c.l.b16 %v174
    %v541 = vunpack.c.h.b16 %v174
    %v542 = vunpack.c.l.b16 %v175
    %v543 = vunpack.c.h.b16 %v175
    %v544 = vunpack.c.l.b16 %v176
    %v545 = vunpack.c.h.b16 %v176
    %v546 = vunpack.c.l.b16 %v177
    %v547 = vunpack.c.h.b16 %v177
    %v548 = vunpack.c.l.b16 %v178
    %v549 = vunpack.c.h.b16 %v178
    %v550 = vunpack.c.l.b16 %v179
    %v551 = vunpack.c.h.b16 %v179
    %v552 = vunpack.c.l.b16 %v180
    %v553 = vunpack.c.h.b16 %v180
    %v554 = vunpack.c.l.b16 %v181
    %v555 = vunpack.c.h.b16 %v181
    %v556 = vunpack.c.l.b16 %v182
    %v557 = vunpack.c.h.b16 %v182
    %v558 = vunpack.c.l.b16 %v183
    %v559 = vunpack.c.h.b16 %v183
    %v560 = vunpack.c.l.b16 %v184
    %v561 = vunpack.c.h.b16 %v184
    %v562 = vunpack.c.l.b16 %v185
    %v563 = vunpack.c.h.b16 %v185
    %v564 = vunpack.c.l.b16 %v186
    %v565 = vunpack.c.h.b16 %v186
    %v566 = vunpack.c.l.b16 %v187
    %v567 = vunpack.c.h.b16 %v187
    %v568 = vunpack.c.l.b16 %v188
    %v569 = vunpack.c.h.b16 %v188
    %v570 = vunpack.c.l.b16 %v189
    %v571 = vunpack.c.h.b16 %v189
    %v572 = vunpack.c.l.b16 %v190
    %v573 = vunpack.c.h.b16 %v190
    %v574 = vunpack.c.l.b16 %v191
    %v575 = vunpack.c.h.b16 %v191
    %v576 = vunpack.c.l.b16 %v192
    %v577 = vunpack.c.h.b16 %v192
    %v578 = vunpack.c.l.b16 %v193
    %v579 = vunpack.c.h.b16 %v193
    %v580 = vunpack.c.l.b16 %v194
    %v581 = vunpack.c.h.b16 %v194
    %v582 = vunpack.c.l.b16 %v195
    %v583 = vunpack.c.h.b16 %v195
    %v584 = vunpack.c.l.b16 %v196
    %v585 = vunpack.c.h.b16 %v196
    %v586 = vunpack.c.l.b16 %v197
    %v587 = vunpack.c.h.b16 %v197
    %v588 = vunpack.c.l.b16 %v198
    %v589 = vunpack.c.h.b16 %v198
    %v590 = vunpack.c.l.b16 %v199
    %v591 = vunpack.c.h.b16 %v199
    %v592 = vunpack.c.l.b16 %v200
    %v593 = vunpack.c.h.b16 %v200
    %v594 = vunpack.c.l.b16 %v201
    %v595 = vunpack.c.h.b16 %v201
    %v596 = vunpack.c.l.b16 %v202
    %v597 = vunpack.c.h.b16 %v202
    %v598 = vunpack.c.l.b16 %v203
    %v599 = vunpack.c.h.b16 %v203
    %v600 = vunpack.c.l.b16 %v204
    %v601 = vunpack.c.h.b16 %v204
    %v602 = vunpack.c.l.b16 %v205
    %v603 = vunpack.c.h.b16 %v205
    %v604 = vunpack.c.l.b16 %v206
    %v605 = vunpack.c.h.b16 %v206
    %v606 = vunpack.c.l.b16 %v207
    %v607 = vunpack.c.h.b16 %v207
    %v608 = vunpack.c.l.b16 %v208
    %v609 = vunpack.c.h.b16 %v208
    %v610 = vunpack.c.l.b16 %v209
    %v611 = vunpack.c.h.b16 %v209
    %v612 = vunpack.c.l.b16 %v210
    %v613 = vunpack.c.h.b16 %v210
    %v614 = vunpack.c.l.b16 %v211
    %v615 = vunpack.c.h.b16 %v211
    %v616 = vunpack.c.l.b16 %v212
    %v617 = vunpack.c.h.b16 %v212
    %v618 = vunpack.c.l.b16 %v213
    %v619 = vunpack.c.h.b16 %v213
    %v620 = vunpack.c.l.b16 %v214
    %v621 = vunpack.c.h.b16 %v214
    %v622 = vunpack.c.l.b16 %v215
    %v623 = vunpack.c.h.b16 %v215
    %v624 = vunpack.c.l.b16 %v216
    %v625 = vunpack.c.h.b16 %v216
    %v626 = vunpack.c.l.b16 %v217
    %v627 = vunpack.c.h.b16 %v217
    %v628 = vunpack.c.l.b16 %v218
    %v629 = vunpack.c.h.b16 %v218
    %v630 = vunpack.c.l.b16 %v219
    %v631 = vunpack.c.h.b16 %v219
    %v632 = vunpack.c.l.b16 %v220
    %v633 = vunpack.c.h.b16 %v220
    %v634 = vunpack.c.l.b16 %v221
    %v635 = vunpack.c.h.b16 %v221
    %v636 = vunpack.c.l.b16 %v222
    %v637 = vunpack.c.h.b16 %v222
    %v638 = vunpack.c.l.b16 %v223
    %v639 = vunpack.c.h.b16 %v223
    %v640 = vunpack.c.l.b16 %v224
    %v641 = vunpack.c.h.b16 %v224
    %v642 = vunpack.c.l.b16 %v225
    %v643 = vunpack.c.h.b16 %v225
    %v644 = vunpack.c.l.b16 %v226
    %v645 = vunpack.c.h.b16 %v226
    %v646 = vunpack.c.l.b16 %v227
    %v647 = vunpack.c.h.b16 %v227
    %v648 = vunpack.c.l.b16 %v228
    %v649 = vunpack.c.h.b16 %v228
    %v650 = vunpack.c.l.b16 %v229
    %v651 = vunpack.c.h.b16 %v229
    %v652 = vunpack.c.l.b16 %v230
    %v653 = vunpack.c.h.b16 %v230
    %v654 = vunpack.c.l.b16 %v231
    %v655 = vunpack.c.h.b16 %v231
    %v656 = vunpack.c.l.b16 %v232
    %v657 = vunpack.c.h.b16 %v232
    %v658 = vunpack.c.l.b16 %v233
    %v659 = vunpack.c.h.b16 %v233
    %v660 = vunpack.c.l.b16 %v234
    %v661 = vunpack.c.h.b16 %v234
    %v662 = vunpack.c.l.b16 %v235
    %v663 = vunpack.c.h.b16 %v235
    %v664 = vunpack.c.l.b16 %v236
    %v665 = vunpack.c.h.b16 %v236
    %v666 = vunpack.c.l.b16 %v237
    %v667 = vunpack.c.h.b16 %v237
    %v668 = vunpack.c.l.b16 %v238
    %v669 = vunpack.c.h.b16 %v238
    %v670 = vunpack.c.l.b16 %v239
    %v671 = vunpack.c.h.b16 %v239
    %v672 = vunpack.c.l.b16 %v240
    %v673 = vunpack.c.h.b16 %v240
    %v674 = vpack.c.b16 %v426, %v418
    %v675 = vpack.c.b16 %v427, %v419
    %v676 = vpack.c.b16 %v428, %v420
    %v677 = vpack.c.b16 %v429, %v421
    %v678 = vpack.c.b16 %v430, %v422
    %v679 = vpack.c.b16 %v431, %v423
    %v680 = vpack.c.b16 %v432, %v424
    %v681 = vpack.c.b16 %v433, %v425
    %v682 = vpack.c.b16 %v442, %v434
    %v683 = vpack.c.b16 %v443, %v435
    %v684 = vpack.c.b16 %v444, %v436
    %v685 = vpack.c.b16 %v445, %v437
    %v686 = vpack.c.b16 %v446, %v438
    %v687 = vpack.c.b16 %v447, %v439
    %v688 = vpack.c.b16 %v448, %v440
    %v689 = vpack.c.b16 %v449, %v441
    %v690 = vpack.c.b16 %v458, %v450
    %v691 = vpack.c.b16 %v459, %v451
    %v692 = vpack.c.b16 %v460, %v452
    %v693 = vpack.c.b16 %v461, %v453
    %v694 = vpack.c.b16 %v462, %v454
    %v695 = vpack.c.b16 %v463, %v455
    %v696 = vpack.c.b16 %v464, %v456
    %v697 = vpack.c.b16 %v465, %v457
    %v698 = vpack.c.b16 %v474, %v466
    %v699 = vpack.c.b16 %v475, %v467
    %v700 = vpack.c.b16 %v476, %v468
    %v701 = vpack.c.b16 %v477, %v469
    %v702 = vpack.c.b16 %v478, %v470
    %v703 = vpack.c.b16 %v479, %v471
    %v704 = vpack.c.b16 %v480, %v472
    %v705 = vpack.c.b16 %v481, %v473
    %v706 = vpack.c.b16 %v490, %v482
    %v707 = vpack.c.b16 %v491, %v483
    %v708 = vpack.c.b16 %v492, %v484
    %v709 = vpack.c.b16 %v493, %v485
    %v710 = vpack.c.b16 %v494, %v486
    %v711 = vpack.c.b16 %v495, %v487
    %v712 = vpack.c.b16 %v496, %v488
    %v713 = vpack.c.b16 %v497, %v489
    %v714 = vpack.c.b16 %v506, %v498
    %v715 = vpack.c.b16 %v507, %v499
    %v716 = vpack.c.b16 %v508, %v500
    %v717 = vpack.c.b16 %v509, %v501
    %v718 = vpack.c.b16 %v510, %v502
    %v719 = vpack.c.b16 %v511, %v503
    %v720 = vpack.c.b16 %v512, %v504
    %v721 = vpack.c.b16 %v513, %v505
    %v722 = vpack.c.b16 %v522, %v514
    %v723 = vpack.c.b16 %v523, %v515
    %v724 = vpack.c.b16 %v524, %v516
    %v725 = vpack.c.b16 %v525, %v517
    %v726 = vpack.c.b16 %v526, %v518
    %v727 = vpack.c.b16 %v527, %v519
    %v728 = vpack.c.b16 %v528, %v520
    %v729 = vpack.c.b16 %v529, %v521
    %v730 = vpack.c.b16 %v538, %v530
    %v731 = vpack.c.b16 %v539, %v531
    %v732 = vpack.c.b16 %v540, %v532
    %v733 = vpack.c.b16 %v541, %v533
    %v734 = vpack.c.b16 %v542, %v534
    %v735 = vpack.c.b16 %v543, %v535
    %v736 = vpack.c.b16 %v544, %v536
    %v737 = vpack.c.b16 %v545, %v537
    %v738 = vpack.c.b16 %v554, %v546
    %v739 = vpack.c.b16 %v555, %v547
    %v740 = vpack.c.b16 %v556, %v548
    %v741 = vpack.c.b16 %v557, %v549
    %v742 = vpack.c.b16 %v558, %v550
    %v743 = vpack.c.b16 %v559, %v551
    %v744 = vpack.c.b16 %v560, %v552
    %v745 = vpack.c.b16 %v561, %v553
    %v746 = vpack.c.b16 %v570, %v562
    %v747 = vpack.c.b16 %v571, %v563
    %v748 = vpack.c.b16 %v572, %v564
    %v749 = vpack.c.b16 %v573, %v565
    %v750 = vpack.c.b16 %v574, %v566
    %v751 = vpack.c.b16 %v575, %v567
    %v752 = vpack.c.b16 %v576, %v568
    %v753 = vpack.c.b16 %v577, %v569
    %v754 = vpack.c.b16 %v586, %v578
    %v755 = vpack.c.b16 %v587, %v579
    %v756 = vpack.c.b16 %v588, %v580
    %v757 = vpack.c.b16 %v589, %v581
    %v758 = vpack.c.b16 %v590, %v582
    %v759 = vpack.c.b16 %v591, %v583
    %v760 = vpack.c.b16 %v592, %v584
    %v761 = vpack.c.b16 %v593, %v585
    %v762 = vpack.c.b16 %v602, %v594
    %v763 = vpack.c.b16 %v603, %v595
    %v764 = vpack.c.b16 %v604, %v596
    %v765 = vpack.c.b16 %v605, %v597
    %v766 = vpack.c.b16 %v606, %v598
    %v767 = vpack.c.b16 %v607, %v599
    %v768 = vpack.c.b16 %v608, %v600
    %v769 = vpack.c.b16 %v609, %v601
    %v770 = vpack.c.b16 %v618, %v610
    %v771 = vpack.c.b16 %v619, %v611
    %v772 = vpack.c.b16 %v620, %v612
    %v773 = vpack.c.b16 %v621, %v613
    %v774 = vpack.c.b16 %v622, %v614
    %v775 = vpack.c.b16 %v623, %v615
    %v776 = vpack.c.b16 %v624, %v616
    %v777 = vpack.c.b16 %v625, %v617
    %v778 = vpack.c.b16 %v634, %v626
    %v779 = vpack.c.b16 %v635, %v627
    %v780 = vpack.c.b16 %v636, %v628
    %v781 = vpack.c.b16 %v637, %v629
    %v782 = vpack.c.b16 %v638, %v630
    %v783 = vpack.c.b16 %v639, %v631
    %v784 = vpack.c.b16 %v640, %v632
    %v785 = vpack.c.b16 %v641, %v633
    %v786 = vpack.c.b16 %v650, %v642
    %v787 = vpack.c.b16 %v651, %v643
    %v788 = vpack.c.b16 %v652, %v644
    %v789 = vpack.c.b16 %v653, %v645
    %v790 = vpack.c.b16 %v654, %v646
    %v791 = vpack.c.b16 %v655, %v647
    %v792 = vpack.c.b16 %v656, %v648
    %v793 = vpack.c.b16 %v657, %v649
    %v794 = vpack.c.b16 %v666, %v658
    %v795 = vpack.c.b16 %v667, %v659
    %v796 = vpack.c.b16 %v668, %v660
    %v797 = vpack.c.b16 %v669, %v661
    %v798 = vpack.c.b16 %v670, %v662
    %v799 = vpack.c.b16 %v671, %v663
    %v800 = vpack.c.b16 %v672, %v664
    %v801 = vpack.c.b16 %v673, %v665
    %930 = vmatprep.subr.bf16.mxu0 %v675
    %931 = vmatpush1.bf16.msra.mxu0 %v674
    %932 = vmatprep.subr.bf16.mxu0 %v683
    %933 = vmatpush1.bf16.msra.mxu0 %v682
    %934 = vmatprep.subr.bf16.mxu0 %v691
    %935 = vmatpush1.bf16.msra.mxu0 %v690
    %936 = vmatprep.subr.bf16.mxu0 %v699
    %937 = vmatpush1.bf16.msra.mxu0 %v698
    %938 = vmatprep.subr.bf16.mxu0 %v707
    %939 = vmatpush1.bf16.msra.mxu0 %v706
    %940 = vmatprep.subr.bf16.mxu0 %v715
    %941 = vmatpush1.bf16.msra.mxu0 %v714
    %942 = vmatprep.subr.bf16.mxu0 %v723
    %943 = vmatpush1.bf16.msra.mxu0 %v722
    %944 = vmatprep.subr.bf16.mxu0 %v731
    %945 = vmatpush1.bf16.msra.mxu0 %v730
    %946 = vmatprep.subr.bf16.mxu0 %v739
    %947 = vmatpush1.bf16.msra.mxu0 %v738
    %948 = vmatprep.subr.bf16.mxu0 %v747
    %949 = vmatpush1.bf16.msra.mxu0 %v746
    %950 = vmatprep.subr.bf16.mxu0 %v755
    %951 = vmatpush1.bf16.msra.mxu0 %v754
    %952 = vmatprep.subr.bf16.mxu0 %v763
    %953 = vmatpush1.bf16.msra.mxu0 %v762
    %954 = vmatprep.subr.bf16.mxu0 %v771
    %955 = vmatpush1.bf16.msra.mxu0 %v770
    %956 = vmatprep.subr.bf16.mxu0 %v779
    %957 = vmatpush1.bf16.msra.mxu0 %v778
    %958 = vmatprep.subr.bf16.mxu0 %v787
    %959 = vmatpush1.bf16.msra.mxu0 %v786
    %960 = vmatprep.subr.bf16.mxu0 %v795
    %961 = vmatpush1.bf16.msra.mxu0 %v794
    %962 = vmatprep.mubr.bf16.mxu0 %v287
    %963 = vmatmul.mubr.bf16.gmra.mrb[0].mxu0 %v286
    %v964 = vpop.f32.mrb[0].mxu0
    %v965 = vadd.f32 %v246, %v964
    %v966 = vpop.f32.mrb[0].mxu0
    %v967 = vadd.f32 %v250, %v966
    %v968 = vpop.f32.mrb[0].mxu0
    %v969 = vpop.f32.mrb[0].mxu0
    %970 = vdwg.mxu0
    %971 = vmatprep.subr.bf16.mxu0 %v677
    %972 = vmatpush1.bf16.msra.mxu0 %v676
    %973 = vmatprep.subr.bf16.mxu0 %v685
    %974 = vmatpush1.bf16.msra.mxu0 %v684
    %975 = vmatprep.subr.bf16.mxu0 %v693
    %976 = vmatpush1.bf16.msra.mxu0 %v692
    %977 = vmatprep.subr.bf16.mxu0 %v701
    %978 = vmatpush1.bf16.msra.mxu0 %v700
    %979 = vmatprep.subr.bf16.mxu0 %v709
    %980 = vmatpush1.bf16.msra.mxu0 %v708
    %981 = vmatprep.subr.bf16.mxu0 %v717
    %982 = vmatpush1.bf16.msra.mxu0 %v716
    %983 = vmatprep.subr.bf16.mxu0 %v725
    %984 = vmatpush1.bf16.msra.mxu0 %v724
    %985 = vmatprep.subr.bf16.mxu0 %v733
    %986 = vmatpush1.bf16.msra.mxu0 %v732
    %987 = vmatprep.subr.bf16.mxu0 %v741
    %988 = vmatpush1.bf16.msra.mxu0 %v740
    %989 = vmatprep.subr.bf16.mxu0 %v749
    %990 = vmatpush1.bf16.msra.mxu0 %v748
    %991 = vmatprep.subr.bf16.mxu0 %v757
    %992 = vmatpush1.bf16.msra.mxu0 %v756
    %993 = vmatprep.subr.bf16.mxu0 %v765
    %994 = vmatpush1.bf16.msra.mxu0 %v764
    %995 = vmatprep.subr.bf16.mxu0 %v773
    %996 = vmatpush1.bf16.msra.mxu0 %v772
    %997 = vmatprep.subr.bf16.mxu0 %v781
    %998 = vmatpush1.bf16.msra.mxu0 %v780
    %999 = vmatprep.subr.bf16.mxu0 %v789
    %1000 = vmatpush1.bf16.msra.mxu0 %v788
    %1001 = vmatprep.subr.bf16.mxu0 %v797
    %1002 = vmatpush1.bf16.msra.mxu0 %v796
    %1003 = vmatprep.mubr.bf16.mxu0 %v287
    %1004 = vmatmul.mubr.bf16.gmra.mrb[0].mxu0 %v286
    %v1005 = vpop.f32.mrb[0].mxu0
    %v1006 = vadd.f32 %v254, %v1005
    %v1007 = vpop.f32.mrb[0].mxu0
    %v1008 = vadd.f32 %v258, %v1007
    %v1009 = vpop.f32.mrb[0].mxu0
    %v1010 = vpop.f32.mrb[0].mxu0
    %1011 = vdwg.mxu0
    %1012 = vmatprep.subr.bf16.mxu0 %v679
    %1013 = vmatpush1.bf16.msra.mxu0 %v678
    %1014 = vmatprep.subr.bf16.mxu0 %v687
    %1015 = vmatpush1.bf16.msra.mxu0 %v686
    %1016 = vmatprep.subr.bf16.mxu0 %v695
    %1017 = vmatpush1.bf16.msra.mxu0 %v694
    %1018 = vmatprep.subr.bf16.mxu0 %v703
    %1019 = vmatpush1.bf16.msra.mxu0 %v702
    %1020 = vmatprep.subr.bf16.mxu0 %v711
    %1021 = vmatpush1.bf16.msra.mxu0 %v710
    %1022 = vmatprep.subr.bf16.mxu0 %v719
    %1023 = vmatpush1.bf16.msra.mxu0 %v718
    %1024 = vmatprep.subr.bf16.mxu0 %v727
    %1025 = vmatpush1.bf16.msra.mxu0 %v726
    %1026 = vmatprep.subr.bf16.mxu0 %v735
    %1027 = vmatpush1.bf16.msra.mxu0 %v734
    %1028 = vmatprep.subr.bf16.mxu0 %v743
    %1029 = vmatpush1.bf16.msra.mxu0 %v742
    %1030 = vmatprep.subr.bf16.mxu0 %v751
    %1031 = vmatpush1.bf16.msra.mxu0 %v750
    %1032 = vmatprep.subr.bf16.mxu0 %v759
    %1033 = vmatpush1.bf16.msra.mxu0 %v758
    %1034 = vmatprep.subr.bf16.mxu0 %v767
    %1035 = vmatpush1.bf16.msra.mxu0 %v766
    %1036 = vmatprep.subr.bf16.mxu0 %v775
    %1037 = vmatpush1.bf16.msra.mxu0 %v774
    %1038 = vmatprep.subr.bf16.mxu0 %v783
    %1039 = vmatpush1.bf16.msra.mxu0 %v782
    %1040 = vmatprep.subr.bf16.mxu0 %v791
    %1041 = vmatpush1.bf16.msra.mxu0 %v790
    %1042 = vmatprep.subr.bf16.mxu0 %v799
    %1043 = vmatpush1.bf16.msra.mxu0 %v798
    %1044 = vmatprep.mubr.bf16.mxu0 %v287
    %1045 = vmatmul.mubr.bf16.gmra.mrb[0].mxu0 %v286
    %v1046 = vpop.f32.mrb[0].mxu0
    %v1047 = vadd.f32 %v262, %v1046
    %v1048 = vpop.f32.mrb[0].mxu0
    %v1049 = vadd.f32 %v266, %v1048
    %v1050 = vpop.f32.mrb[0].mxu0
    %v1051 = vpop.f32.mrb[0].mxu0
    %1052 = vdwg.mxu0
    %1053 = vmatprep.subr.bf16.mxu0 %v681
    %1054 = vmatpush1.bf16.msra.mxu0 %v680
    %1055 = vmatprep.subr.bf16.mxu0 %v689
    %1056 = vmatpush1.bf16.msra.mxu0 %v688
    %1057 = vmatprep.subr.bf16.mxu0 %v697
    %1058 = vmatpush1.bf16.msra.mxu0 %v696
    %1059 = vmatprep.subr.bf16.mxu0 %v705
    %1060 = vmatpush1.bf16.msra.mxu0 %v704
    %1061 = vmatprep.subr.bf16.mxu0 %v713
    %1062 = vmatpush1.bf16.msra.mxu0 %v712
    %1063 = vmatprep.subr.bf16.mxu0 %v721
    %1064 = vmatpush1.bf16.msra.mxu0 %v720
    %1065 = vmatprep.subr.bf16.mxu0 %v729
    %1066 = vmatpush1.bf16.msra.mxu0 %v728
    %1067 = vmatprep.subr.bf16.mxu0 %v737
    %1068 = vmatpush1.bf16.msra.mxu0 %v736
    %1069 = vmatprep.subr.bf16.mxu0 %v745
    %1070 = vmatpush1.bf16.msra.mxu0 %v744
    %1071 = vmatprep.subr.bf16.mxu0 %v753
    %1072 = vmatpush1.bf16.msra.mxu0 %v752
    %1073 = vmatprep.subr.bf16.mxu0 %v761
    %1074 = vmatpush1.bf16.msra.mxu0 %v760
    %1075 = vmatprep.subr.bf16.mxu0 %v769
    %1076 = vmatpush1.bf16.msra.mxu0 %v768
    %1077 = vmatprep.subr.bf16.mxu0 %v777
    %1078 = vmatpush1.bf16.msra.mxu0 %v776
    %1079 = vmatprep.subr.bf16.mxu0 %v785
    %1080 = vmatpush1.bf16.msra.mxu0 %v784
    %1081 = vmatprep.subr.bf16.mxu0 %v793
    %1082 = vmatpush1.bf16.msra.mxu0 %v792
    %1083 = vmatprep.subr.bf16.mxu0 %v801
    %1084 = vmatpush1.bf16.msra.mxu0 %v800
    %1085 = vmatprep.mubr.bf16.mxu0 %v287
    %1086 = vmatmul.mubr.bf16.gmra.mrb[0].mxu0 %v286
    %v1087 = vpop.f32.mrb[0].mxu0
    %v1088 = vadd.f32 %v270, %v1087
    %v1089 = vpop.f32.mrb[0].mxu0
    %v1090 = vadd.f32 %v274, %v1089
    %v1091 = vpop.f32.mrb[0].mxu0
    %v1092 = vpop.f32.mrb[0].mxu0
    %1093 = vdwg.mxu0
    %v1094 = vmax.f32 %v965, 0.0
    %v1095 = vmax.f32 %v967, 0.0
    %v1096 = vmax.f32 %v1006, 0.0
    %v1097 = vmax.f32 %v1008, 0.0
    %v1098 = vmax.f32 %v1047, 0.0
    %v1099 = vmax.f32 %v1049, 0.0
    %v1100 = vmax.f32 %v1088, 0.0
    %v1101 = vmax.f32 %v1090, 0.0
    %v1102 = vpack.c.bf16 %v1094, %v1094
    %v1103 = vpack.c.bf16 %v1095, %v1095
    %v1104 = vpack.c.bf16 %v1096, %v1096
    %v1105 = vpack.c.bf16 %v1097, %v1097
    %v1106 = vpack.c.bf16 %v1098, %v1098
    %v1107 = vpack.c.bf16 %v1099, %v1099
    %v1108 = vpack.c.bf16 %v1100, %v1100
    %v1109 = vpack.c.bf16 %v1101, %v1101
    %v1110 = vld [vmem:[#allocation8] sm:$0xff]
    %v1111 = vld [vmem:[#allocation8 + $0x8] sm:$0xff]
    %v1112 = vld [vmem:[#allocation8 + $0x10] sm:$0xff]
    %v1113 = vld [vmem:[#allocation8 + $0x18] sm:$0xff]
    %v1114 = vld [vmem:[#allocation8 + $0x20] sm:$0xff]
    %v1115 = vld [vmem:[#allocation8 + $0x28] sm:$0xff]
    %v1116 = vld [vmem:[#allocation8 + $0x30] sm:$0xff]
    %v1117 = vld [vmem:[#allocation8 + $0x38] sm:$0xff]
    %v1118 = vld [vmem:[#allocation8 + $0x40] sm:$0xff]
    %v1119 = vld [vmem:[#allocation8 + $0x48] sm:$0xff]
    %v1120 = vld [vmem:[#allocation8 + $0x50] sm:$0xff]
    %v1121 = vld [vmem:[#allocation8 + $0x58] sm:$0xff]
    %v1122 = vld [vmem:[#allocation8 + $0x60] sm:$0xff]
    %v1123 = vld [vmem:[#allocation8 + $0x68] sm:$0xff]
    %v1124 = vld [vmem:[#allocation8 + $0x70] sm:$0xff]
    %v1125 = vld [vmem:[#allocation8 + $0x78] sm:$0xff]
    %v1126 = vld [vmem:[#allocation8 + $0x80] sm:$0xff]
    %v1127 = vld [vmem:[#allocation8 + $0x88] sm:$0xff]
    %v1128 = vld [vmem:[#allocation8 + $0x90] sm:$0xff]
    %v1129 = vld [vmem:[#allocation8 + $0x98] sm:$0xff]
    %v1130 = vld [vmem:[#allocation8 + $0xa0] sm:$0xff]
    %v1131 = vld [vmem:[#allocation8 + $0xa8] sm:$0xff]
    %v1132 = vld [vmem:[#allocation8 + $0xb0] sm:$0xff]
    %v1133 = vld [vmem:[#allocation8 + $0xb8] sm:$0xff]
    %v1134 = vld [vmem:[#allocation8 + $0xc0] sm:$0xff]
    %v1135 = vld [vmem:[#allocation8 + $0xc8] sm:$0xff]
    %v1136 = vld [vmem:[#allocation8 + $0xd0] sm:$0xff]
    %v1137 = vld [vmem:[#allocation8 + $0xd8] sm:$0xff]
    %v1138 = vld [vmem:[#allocation8 + $0xe0] sm:$0xff]
    %v1139 = vld [vmem:[#allocation8 + $0xe8] sm:$0xff]
    %v1140 = vld [vmem:[#allocation8 + $0xf0] sm:$0xff]
    %v1141 = vld [vmem:[#allocation8 + $0xf8] sm:$0xff]
    %v1142 = vld [vmem:[#allocation8 + $0x100] sm:$0xff]
    %v1143 = vld [vmem:[#allocation8 + $0x108] sm:$0xff]
    %v1144 = vld [vmem:[#allocation8 + $0x110] sm:$0xff]
    %v1145 = vld [vmem:[#allocation8 + $0x118] sm:$0xff]
    %v1146 = vld [vmem:[#allocation8 + $0x120] sm:$0xff]
    %v1147 = vld [vmem:[#allocation8 + $0x128] sm:$0xff]
    %v1148 = vld [vmem:[#allocation8 + $0x130] sm:$0xff]
    %v1149 = vld [vmem:[#allocation8 + $0x138] sm:$0xff]
    %v1150 = vld [vmem:[#allocation8 + $0x140] sm:$0xff]
    %v1151 = vld [vmem:[#allocation8 + $0x148] sm:$0xff]
    %v1152 = vld [vmem:[#allocation8 + $0x150] sm:$0xff]
    %v1153 = vld [vmem:[#allocation8 + $0x158] sm:$0xff]
    %v1154 = vld [vmem:[#allocation8 + $0x160] sm:$0xff]
    %v1155 = vld [vmem:[#allocation8 + $0x168] sm:$0xff]
    %v1156 = vld [vmem:[#allocation8 + $0x170] sm:$0xff]
    %v1157 = vld [vmem:[#allocation8 + $0x178] sm:$0xff]
    %v1158 = vld [vmem:[#allocation8 + $0x180] sm:$0xff]
    %v1159 = vld [vmem:[#allocation8 + $0x188] sm:$0xff]
    %v1160 = vld [vmem:[#allocation8 + $0x190] sm:$0xff]
    %v1161 = vld [vmem:[#allocation8 + $0x198] sm:$0xff]
    %v1162 = vld [vmem:[#allocation8 + $0x1a0] sm:$0xff]
    %v1163 = vld [vmem:[#allocation8 + $0x1a8] sm:$0xff]
    %v1164 = vld [vmem:[#allocation8 + $0x1b0] sm:$0xff]
    %v1165 = vld [vmem:[#allocation8 + $0x1b8] sm:$0xff]
    %v1166 = vld [vmem:[#allocation8 + $0x1c0] sm:$0xff]
    %v1167 = vld [vmem:[#allocation8 + $0x1c8] sm:$0xff]
    %v1168 = vld [vmem:[#allocation8 + $0x1d0] sm:$0xff]
    %v1169 = vld [vmem:[#allocation8 + $0x1d8] sm:$0xff]
    %v1170 = vld [vmem:[#allocation8 + $0x1e0] sm:$0xff]
    %v1171 = vld [vmem:[#allocation8 + $0x1e8] sm:$0xff]
    %v1172 = vld [vmem:[#allocation8 + $0x1f0] sm:$0xff]
    %v1173 = vld [vmem:[#allocation8 + $0x1f8] sm:$0xff]
    %v1174 = vld [vmem:[#allocation8 + $0x200] sm:$0xff]
    %v1175 = vld [vmem:[#allocation8 + $0x208] sm:$0xff]
    %v1176 = vld [vmem:[#allocation8 + $0x210] sm:$0xff]
    %v1177 = vld [vmem:[#allocation8 + $0x218] sm:$0xff]
    %v1178 = vld [vmem:[#allocation8 + $0x220] sm:$0xff]
    %v1179 = vld [vmem:[#allocation8 + $0x228] sm:$0xff]
    %v1180 = vld [vmem:[#allocation8 + $0x230] sm:$0xff]
    %v1181 = vld [vmem:[#allocation8 + $0x238] sm:$0xff]
    %v1182 = vld [vmem:[#allocation8 + $0x240] sm:$0xff]
    %v1183 = vld [vmem:[#allocation8 + $0x248] sm:$0xff]
    %v1184 = vld [vmem:[#allocation8 + $0x250] sm:$0xff]
    %v1185 = vld [vmem:[#allocation8 + $0x258] sm:$0xff]
    %v1186 = vld [vmem:[#allocation8 + $0x260] sm:$0xff]
    %v1187 = vld [vmem:[#allocation8 + $0x268] sm:$0xff]
    %v1188 = vld [vmem:[#allocation8 + $0x270] sm:$0xff]
    %v1189 = vld [vmem:[#allocation8 + $0x278] sm:$0xff]
    %v1190 = vld [vmem:[#allocation8 + $0x280] sm:$0xff]
    %v1191 = vld [vmem:[#allocation8 + $0x288] sm:$0xff]
    %v1192 = vld [vmem:[#allocation8 + $0x290] sm:$0xff]
    %v1193 = vld [vmem:[#allocation8 + $0x298] sm:$0xff]
    %v1194 = vld [vmem:[#allocation8 + $0x2a0] sm:$0xff]
    %v1195 = vld [vmem:[#allocation8 + $0x2a8] sm:$0xff]
    %v1196 = vld [vmem:[#allocation8 + $0x2b0] sm:$0xff]
    %v1197 = vld [vmem:[#allocation8 + $0x2b8] sm:$0xff]
    %v1198 = vld [vmem:[#allocation8 + $0x2c0] sm:$0xff]
    %v1199 = vld [vmem:[#allocation8 + $0x2c8] sm:$0xff]
    %v1200 = vld [vmem:[#allocation8 + $0x2d0] sm:$0xff]
    %v1201 = vld [vmem:[#allocation8 + $0x2d8] sm:$0xff]
    %v1202 = vld [vmem:[#allocation8 + $0x2e0] sm:$0xff]
    %v1203 = vld [vmem:[#allocation8 + $0x2e8] sm:$0xff]
    %v1204 = vld [vmem:[#allocation8 + $0x2f0] sm:$0xff]
    %v1205 = vld [vmem:[#allocation8 + $0x2f8] sm:$0xff]
    %v1206 = vld [vmem:[#allocation8 + $0x300] sm:$0xff]
    %v1207 = vld [vmem:[#allocation8 + $0x308] sm:$0xff]
    %v1208 = vld [vmem:[#allocation8 + $0x310] sm:$0xff]
    %v1209 = vld [vmem:[#allocation8 + $0x318] sm:$0xff]
    %v1210 = vld [vmem:[#allocation8 + $0x320] sm:$0xff]
    %v1211 = vld [vmem:[#allocation8 + $0x328] sm:$0xff]
    %v1212 = vld [vmem:[#allocation8 + $0x330] sm:$0xff]
    %v1213 = vld [vmem:[#allocation8 + $0x338] sm:$0xff]
    %v1214 = vld [vmem:[#allocation8 + $0x340] sm:$0xff]
    %v1215 = vld [vmem:[#allocation8 + $0x348] sm:$0xff]
    %v1216 = vld [vmem:[#allocation8 + $0x350] sm:$0xff]
    %v1217 = vld [vmem:[#allocation8 + $0x358] sm:$0xff]
    %v1218 = vld [vmem:[#allocation8 + $0x360] sm:$0xff]
    %v1219 = vld [vmem:[#allocation8 + $0x368] sm:$0xff]
    %v1220 = vld [vmem:[#allocation8 + $0x370] sm:$0xff]
    %v1221 = vld [vmem:[#allocation8 + $0x378] sm:$0xff]
    %v1222 = vld [vmem:[#allocation8 + $0x380] sm:$0xff]
    %v1223 = vld [vmem:[#allocation8 + $0x388] sm:$0xff]
    %v1224 = vld [vmem:[#allocation8 + $0x390] sm:$0xff]
    %v1225 = vld [vmem:[#allocation8 + $0x398] sm:$0xff]
    %v1226 = vld [vmem:[#allocation8 + $0x3a0] sm:$0xff]
    %v1227 = vld [vmem:[#allocation8 + $0x3a8] sm:$0xff]
    %v1228 = vld [vmem:[#allocation8 + $0x3b0] sm:$0xff]
    %v1229 = vld [vmem:[#allocation8 + $0x3b8] sm:$0xff]
    %v1230 = vld [vmem:[#allocation8 + $0x3c0] sm:$0xff]
    %v1231 = vld [vmem:[#allocation8 + $0x3c8] sm:$0xff]
    %v1232 = vld [vmem:[#allocation8 + $0x3d0] sm:$0xff]
    %v1233 = vld [vmem:[#allocation8 + $0x3d8] sm:$0xff]
    %v1234 = vld [vmem:[#allocation8 + $0x3e0] sm:$0xff]
    %v1235 = vld [vmem:[#allocation8 + $0x3e8] sm:$0xff]
    %v1236 = vld [vmem:[#allocation8 + $0x3f0] sm:$0xff]
    %v1237 = vld [vmem:[#allocation8 + $0x3f8] sm:$0xff]
    %v1238 = vld [vmem:[#allocation8 + $0x400] sm:$0xff]
    %v1239 = vld [vmem:[#allocation8 + $0x408] sm:$0xff]
    %v1240 = vld [vmem:[#allocation8 + $0x410] sm:$0xff]
    %v1241 = vld [vmem:[#allocation8 + $0x418] sm:$0xff]
    %v1242 = vld [vmem:[#allocation8 + $0x420] sm:$0xff]
    %v1243 = vld [vmem:[#allocation8 + $0x428] sm:$0xff]
    %v1244 = vld [vmem:[#allocation8 + $0x430] sm:$0xff]
    %v1245 = vld [vmem:[#allocation8 + $0x438] sm:$0xff]
    %v1246 = vld [vmem:[#allocation8 + $0x440] sm:$0xff]
    %v1247 = vld [vmem:[#allocation8 + $0x448] sm:$0xff]
    %v1248 = vld [vmem:[#allocation8 + $0x450] sm:$0xff]
    %v1249 = vld [vmem:[#allocation8 + $0x458] sm:$0xff]
    %v1250 = vld [vmem:[#allocation8 + $0x460] sm:$0xff]
    %v1251 = vld [vmem:[#allocation8 + $0x468] sm:$0xff]
    %v1252 = vld [vmem:[#allocation8 + $0x470] sm:$0xff]
    %v1253 = vld [vmem:[#allocation8 + $0x478] sm:$0xff]
    %v1254 = vld [vmem:[#allocation8 + $0x480] sm:$0xff]
    %v1255 = vld [vmem:[#allocation8 + $0x488] sm:$0xff]
    %v1256 = vld [vmem:[#allocation8 + $0x490] sm:$0xff]
    %v1257 = vld [vmem:[#allocation8 + $0x498] sm:$0xff]
    %v1258 = vld [vmem:[#allocation8 + $0x4a0] sm:$0xff]
    %v1259 = vld [vmem:[#allocation8 + $0x4a8] sm:$0xff]
    %v1260 = vld [vmem:[#allocation8 + $0x4b0] sm:$0xff]
    %v1261 = vld [vmem:[#allocation8 + $0x4b8] sm:$0xff]
    %v1262 = vld [vmem:[#allocation8 + $0x4c0] sm:$0xff]
    %v1263 = vld [vmem:[#allocation8 + $0x4c8] sm:$0xff]
    %v1264 = vld [vmem:[#allocation8 + $0x4d0] sm:$0xff]
    %v1265 = vld [vmem:[#allocation8 + $0x4d8] sm:$0xff]
    %v1266 = vld [vmem:[#allocation8 + $0x4e0] sm:$0xff]
    %v1267 = vld [vmem:[#allocation8 + $0x4e8] sm:$0xff]
    %v1268 = vld [vmem:[#allocation8 + $0x4f0] sm:$0xff]
    %v1269 = vld [vmem:[#allocation8 + $0x4f8] sm:$0xff]
    %v1270 = vld [vmem:[#allocation8 + $0x500] sm:$0xff]
    %v1271 = vld [vmem:[#allocation8 + $0x508] sm:$0xff]
    %v1272 = vld [vmem:[#allocation8 + $0x510] sm:$0xff]
    %v1273 = vld [vmem:[#allocation8 + $0x518] sm:$0xff]
    %v1274 = vld [vmem:[#allocation8 + $0x520] sm:$0xff]
    %v1275 = vld [vmem:[#allocation8 + $0x528] sm:$0xff]
    %v1276 = vld [vmem:[#allocation8 + $0x530] sm:$0xff]
    %v1277 = vld [vmem:[#allocation8 + $0x538] sm:$0xff]
    %v1278 = vld [vmem:[#allocation8 + $0x540] sm:$0xff]
    %v1279 = vld [vmem:[#allocation8 + $0x548] sm:$0xff]
    %v1280 = vld [vmem:[#allocation8 + $0x550] sm:$0xff]
    %v1281 = vld [vmem:[#allocation8 + $0x558] sm:$0xff]
    %v1282 = vld [vmem:[#allocation8 + $0x560] sm:$0xff]
    %v1283 = vld [vmem:[#allocation8 + $0x568] sm:$0xff]
    %v1284 = vld [vmem:[#allocation8 + $0x570] sm:$0xff]
    %v1285 = vld [vmem:[#allocation8 + $0x578] sm:$0xff]
    %v1286 = vld [vmem:[#allocation8 + $0x580] sm:$0xff]
    %v1287 = vld [vmem:[#allocation8 + $0x588] sm:$0xff]
    %v1288 = vld [vmem:[#allocation8 + $0x590] sm:$0xff]
    %v1289 = vld [vmem:[#allocation8 + $0x598] sm:$0xff]
    %v1290 = vld [vmem:[#allocation8 + $0x5a0] sm:$0xff]
    %v1291 = vld [vmem:[#allocation8 + $0x5a8] sm:$0xff]
    %v1292 = vld [vmem:[#allocation8 + $0x5b0] sm:$0xff]
    %v1293 = vld [vmem:[#allocation8 + $0x5b8] sm:$0xff]
    %v1294 = vld [vmem:[#allocation8 + $0x5c0] sm:$0xff]
    %v1295 = vld [vmem:[#allocation8 + $0x5c8] sm:$0xff]
    %v1296 = vld [vmem:[#allocation8 + $0x5d0] sm:$0xff]
    %v1297 = vld [vmem:[#allocation8 + $0x5d8] sm:$0xff]
    %v1298 = vld [vmem:[#allocation8 + $0x5e0] sm:$0xff]
    %v1299 = vld [vmem:[#allocation8 + $0x5e8] sm:$0xff]
    %v1300 = vld [vmem:[#allocation8 + $0x5f0] sm:$0xff]
    %v1301 = vld [vmem:[#allocation8 + $0x5f8] sm:$0xff]
    %v1302 = vld [vmem:[#allocation8 + $0x600] sm:$0xff]
    %v1303 = vld [vmem:[#allocation8 + $0x608] sm:$0xff]
    %v1304 = vld [vmem:[#allocation8 + $0x610] sm:$0xff]
    %v1305 = vld [vmem:[#allocation8 + $0x618] sm:$0xff]
    %v1306 = vld [vmem:[#allocation8 + $0x620] sm:$0xff]
    %v1307 = vld [vmem:[#allocation8 + $0x628] sm:$0xff]
    %v1308 = vld [vmem:[#allocation8 + $0x630] sm:$0xff]
    %v1309 = vld [vmem:[#allocation8 + $0x638] sm:$0xff]
    %v1310 = vld [vmem:[#allocation8 + $0x640] sm:$0xff]
    %v1311 = vld [vmem:[#allocation8 + $0x648] sm:$0xff]
    %v1312 = vld [vmem:[#allocation8 + $0x650] sm:$0xff]
    %v1313 = vld [vmem:[#allocation8 + $0x658] sm:$0xff]
    %v1314 = vld [vmem:[#allocation8 + $0x660] sm:$0xff]
    %v1315 = vld [vmem:[#allocation8 + $0x668] sm:$0xff]
    %v1316 = vld [vmem:[#allocation8 + $0x670] sm:$0xff]
    %v1317 = vld [vmem:[#allocation8 + $0x678] sm:$0xff]
    %v1318 = vld [vmem:[#allocation8 + $0x680] sm:$0xff]
    %v1319 = vld [vmem:[#allocation8 + $0x688] sm:$0xff]
    %v1320 = vld [vmem:[#allocation8 + $0x690] sm:$0xff]
    %v1321 = vld [vmem:[#allocation8 + $0x698] sm:$0xff]
    %v1322 = vld [vmem:[#allocation8 + $0x6a0] sm:$0xff]
    %v1323 = vld [vmem:[#allocation8 + $0x6a8] sm:$0xff]
    %v1324 = vld [vmem:[#allocation8 + $0x6b0] sm:$0xff]
    %v1325 = vld [vmem:[#allocation8 + $0x6b8] sm:$0xff]
    %v1326 = vld [vmem:[#allocation8 + $0x6c0] sm:$0xff]
    %v1327 = vld [vmem:[#allocation8 + $0x6c8] sm:$0xff]
    %v1328 = vld [vmem:[#allocation8 + $0x6d0] sm:$0xff]
    %v1329 = vld [vmem:[#allocation8 + $0x6d8] sm:$0xff]
    %v1330 = vld [vmem:[#allocation8 + $0x6e0] sm:$0xff]
    %v1331 = vld [vmem:[#allocation8 + $0x6e8] sm:$0xff]
    %v1332 = vld [vmem:[#allocation8 + $0x6f0] sm:$0xff]
    %v1333 = vld [vmem:[#allocation8 + $0x6f8] sm:$0xff]
    %v1334 = vld [vmem:[#allocation8 + $0x700] sm:$0xff]
    %v1335 = vld [vmem:[#allocation8 + $0x708] sm:$0xff]
    %v1336 = vld [vmem:[#allocation8 + $0x710] sm:$0xff]
    %v1337 = vld [vmem:[#allocation8 + $0x718] sm:$0xff]
    %v1338 = vld [vmem:[#allocation8 + $0x720] sm:$0xff]
    %v1339 = vld [vmem:[#allocation8 + $0x728] sm:$0xff]
    %v1340 = vld [vmem:[#allocation8 + $0x730] sm:$0xff]
    %v1341 = vld [vmem:[#allocation8 + $0x738] sm:$0xff]
    %v1342 = vld [vmem:[#allocation8 + $0x740] sm:$0xff]
    %v1343 = vld [vmem:[#allocation8 + $0x748] sm:$0xff]
    %v1344 = vld [vmem:[#allocation8 + $0x750] sm:$0xff]
    %v1345 = vld [vmem:[#allocation8 + $0x758] sm:$0xff]
    %v1346 = vld [vmem:[#allocation8 + $0x760] sm:$0xff]
    %v1347 = vld [vmem:[#allocation8 + $0x768] sm:$0xff]
    %v1348 = vld [vmem:[#allocation8 + $0x770] sm:$0xff]
    %v1349 = vld [vmem:[#allocation8 + $0x778] sm:$0xff]
    %v1350 = vld [vmem:[#allocation8 + $0x780] sm:$0xff]
    %v1351 = vld [vmem:[#allocation8 + $0x788] sm:$0xff]
    %v1352 = vld [vmem:[#allocation8 + $0x790] sm:$0xff]
    %v1353 = vld [vmem:[#allocation8 + $0x798] sm:$0xff]
    %v1354 = vld [vmem:[#allocation8 + $0x7a0] sm:$0xff]
    %v1355 = vld [vmem:[#allocation8 + $0x7a8] sm:$0xff]
    %v1356 = vld [vmem:[#allocation8 + $0x7b0] sm:$0xff]
    %v1357 = vld [vmem:[#allocation8 + $0x7b8] sm:$0xff]
    %v1358 = vld [vmem:[#allocation8 + $0x7c0] sm:$0xff]
    %v1359 = vld [vmem:[#allocation8 + $0x7c8] sm:$0xff]
    %v1360 = vld [vmem:[#allocation8 + $0x7d0] sm:$0xff]
    %v1361 = vld [vmem:[#allocation8 + $0x7d8] sm:$0xff]
    %v1362 = vld [vmem:[#allocation8 + $0x7e0] sm:$0xff]
    %v1363 = vld [vmem:[#allocation8 + $0x7e8] sm:$0xff]
    %v1364 = vld [vmem:[#allocation8 + $0x7f0] sm:$0xff]
    %v1365 = vld [vmem:[#allocation8 + $0x7f8] sm:$0xff]
    %v1366 = vld [vmem:[%s4] sm:$0xf]
    %v1368 = vlaneseq
    %v1369 = vshrl.u32 %v1368, 7
    %v1370 = vsub.s32 0, %v1369
    %v1371 = vrot.slane %v1366, %v1370
    %v1372 = vlaneseq
    %v1373 = vshrl.u32 %v1372, 7
    %v1374 = vsub.s32 1, %v1373
    %v1375 = vrot.slane %v1366, %v1374
    %v1376 = vlaneseq
    %v1377 = vshrl.u32 %v1376, 7
    %v1378 = vsub.s32 2, %v1377
    %v1379 = vrot.slane %v1366, %v1378
    %v1380 = vlaneseq
    %v1381 = vshrl.u32 %v1380, 7
    %v1382 = vsub.s32 3, %v1381
    %v1383 = vrot.slane %v1366, %v1382
    %v1644 = vunpack.c.l.b16 %v1110
    %v1645 = vunpack.c.h.b16 %v1110
    %v1646 = vunpack.c.l.b16 %v1111
    %v1647 = vunpack.c.h.b16 %v1111
    %v1648 = vunpack.c.l.b16 %v1112
    %v1649 = vunpack.c.h.b16 %v1112
    %v1650 = vunpack.c.l.b16 %v1113
    %v1651 = vunpack.c.h.b16 %v1113
    %v1652 = vunpack.c.l.b16 %v1114
    %v1653 = vunpack.c.h.b16 %v1114
    %v1654 = vunpack.c.l.b16 %v1115
    %v1655 = vunpack.c.h.b16 %v1115
    %v1656 = vunpack.c.l.b16 %v1116
    %v1657 = vunpack.c.h.b16 %v1116
    %v1658 = vunpack.c.l.b16 %v1117
    %v1659 = vunpack.c.h.b16 %v1117
    %v1660 = vunpack.c.l.b16 %v1118
    %v1661 = vunpack.c.h.b16 %v1118
    %v1662 = vunpack.c.l.b16 %v1119
    %v1663 = vunpack.c.h.b16 %v1119
    %v1664 = vunpack.c.l.b16 %v1120
    %v1665 = vunpack.c.h.b16 %v1120
    %v1666 = vunpack.c.l.b16 %v1121
    %v1667 = vunpack.c.h.b16 %v1121
    %v1668 = vunpack.c.l.b16 %v1122
    %v1669 = vunpack.c.h.b16 %v1122
    %v1670 = vunpack.c.l.b16 %v1123
    %v1671 = vunpack.c.h.b16 %v1123
    %v1672 = vunpack.c.l.b16 %v1124
    %v1673 = vunpack.c.h.b16 %v1124
    %v1674 = vunpack.c.l.b16 %v1125
    %v1675 = vunpack.c.h.b16 %v1125
    %v1676 = vunpack.c.l.b16 %v1126
    %v1677 = vunpack.c.h.b16 %v1126
    %v1678 = vunpack.c.l.b16 %v1127
    %v1679 = vunpack.c.h.b16 %v1127
    %v1680 = vunpack.c.l.b16 %v1128
    %v1681 = vunpack.c.h.b16 %v1128
    %v1682 = vunpack.c.l.b16 %v1129
    %v1683 = vunpack.c.h.b16 %v1129
    %v1684 = vunpack.c.l.b16 %v1130
    %v1685 = vunpack.c.h.b16 %v1130
    %v1686 = vunpack.c.l.b16 %v1131
    %v1687 = vunpack.c.h.b16 %v1131
    %v1688 = vunpack.c.l.b16 %v1132
    %v1689 = vunpack.c.h.b16 %v1132
    %v1690 = vunpack.c.l.b16 %v1133
    %v1691 = vunpack.c.h.b16 %v1133
    %v1692 = vunpack.c.l.b16 %v1134
    %v1693 = vunpack.c.h.b16 %v1134
    %v1694 = vunpack.c.l.b16 %v1135
    %v1695 = vunpack.c.h.b16 %v1135
    %v1696 = vunpack.c.l.b16 %v1136
    %v1697 = vunpack.c.h.b16 %v1136
    %v1698 = vunpack.c.l.b16 %v1137
    %v1699 = vunpack.c.h.b16 %v1137
    %v1700 = vunpack.c.l.b16 %v1138
    %v1701 = vunpack.c.h.b16 %v1138
    %v1702 = vunpack.c.l.b16 %v1139
    %v1703 = vunpack.c.h.b16 %v1139
    %v1704 = vunpack.c.l.b16 %v1140
    %v1705 = vunpack.c.h.b16 %v1140
    %v1706 = vunpack.c.l.b16 %v1141
    %v1707 = vunpack.c.h.b16 %v1141
    %v1708 = vunpack.c.l.b16 %v1142
    %v1709 = vunpack.c.h.b16 %v1142
    %v1710 = vunpack.c.l.b16 %v1143
    %v1711 = vunpack.c.h.b16 %v1143
    %v1712 = vunpack.c.l.b16 %v1144
    %v1713 = vunpack.c.h.b16 %v1144
    %v1714 = vunpack.c.l.b16 %v1145
    %v1715 = vunpack.c.h.b16 %v1145
    %v1716 = vunpack.c.l.b16 %v1146
    %v1717 = vunpack.c.h.b16 %v1146
    %v1718 = vunpack.c.l.b16 %v1147
    %v1719 = vunpack.c.h.b16 %v1147
    %v1720 = vunpack.c.l.b16 %v1148
    %v1721 = vunpack.c.h.b16 %v1148
    %v1722 = vunpack.c.l.b16 %v1149
    %v1723 = vunpack.c.h.b16 %v1149
    %v1724 = vunpack.c.l.b16 %v1150
    %v1725 = vunpack.c.h.b16 %v1150
    %v1726 = vunpack.c.l.b16 %v1151
    %v1727 = vunpack.c.h.b16 %v1151
    %v1728 = vunpack.c.l.b16 %v1152
    %v1729 = vunpack.c.h.b16 %v1152
    %v1730 = vunpack.c.l.b16 %v1153
    %v1731 = vunpack.c.h.b16 %v1153
    %v1732 = vunpack.c.l.b16 %v1154
    %v1733 = vunpack.c.h.b16 %v1154
    %v1734 = vunpack.c.l.b16 %v1155
    %v1735 = vunpack.c.h.b16 %v1155
    %v1736 = vunpack.c.l.b16 %v1156
    %v1737 = vunpack.c.h.b16 %v1156
    %v1738 = vunpack.c.l.b16 %v1157
    %v1739 = vunpack.c.h.b16 %v1157
    %v1740 = vunpack.c.l.b16 %v1158
    %v1741 = vunpack.c.h.b16 %v1158
    %v1742 = vunpack.c.l.b16 %v1159
    %v1743 = vunpack.c.h.b16 %v1159
    %v1744 = vunpack.c.l.b16 %v1160
    %v1745 = vunpack.c.h.b16 %v1160
    %v1746 = vunpack.c.l.b16 %v1161
    %v1747 = vunpack.c.h.b16 %v1161
    %v1748 = vunpack.c.l.b16 %v1162
    %v1749 = vunpack.c.h.b16 %v1162
    %v1750 = vunpack.c.l.b16 %v1163
    %v1751 = vunpack.c.h.b16 %v1163
    %v1752 = vunpack.c.l.b16 %v1164
    %v1753 = vunpack.c.h.b16 %v1164
    %v1754 = vunpack.c.l.b16 %v1165
    %v1755 = vunpack.c.h.b16 %v1165
    %v1756 = vunpack.c.l.b16 %v1166
    %v1757 = vunpack.c.h.b16 %v1166
    %v1758 = vunpack.c.l.b16 %v1167
    %v1759 = vunpack.c.h.b16 %v1167
    %v1760 = vunpack.c.l.b16 %v1168
    %v1761 = vunpack.c.h.b16 %v1168
    %v1762 = vunpack.c.l.b16 %v1169
    %v1763 = vunpack.c.h.b16 %v1169
    %v1764 = vunpack.c.l.b16 %v1170
    %v1765 = vunpack.c.h.b16 %v1170
    %v1766 = vunpack.c.l.b16 %v1171
    %v1767 = vunpack.c.h.b16 %v1171
    %v1768 = vunpack.c.l.b16 %v1172
    %v1769 = vunpack.c.h.b16 %v1172
    %v1770 = vunpack.c.l.b16 %v1173
    %v1771 = vunpack.c.h.b16 %v1173
    %v1772 = vunpack.c.l.b16 %v1174
    %v1773 = vunpack.c.h.b16 %v1174
    %v1774 = vunpack.c.l.b16 %v1175
    %v1775 = vunpack.c.h.b16 %v1175
    %v1776 = vunpack.c.l.b16 %v1176
    %v1777 = vunpack.c.h.b16 %v1176
    %v1778 = vunpack.c.l.b16 %v1177
    %v1779 = vunpack.c.h.b16 %v1177
    %v1780 = vunpack.c.l.b16 %v1178
    %v1781 = vunpack.c.h.b16 %v1178
    %v1782 = vunpack.c.l.b16 %v1179
    %v1783 = vunpack.c.h.b16 %v1179
    %v1784 = vunpack.c.l.b16 %v1180
    %v1785 = vunpack.c.h.b16 %v1180
    %v1786 = vunpack.c.l.b16 %v1181
    %v1787 = vunpack.c.h.b16 %v1181
    %v1788 = vunpack.c.l.b16 %v1182
    %v1789 = vunpack.c.h.b16 %v1182
    %v1790 = vunpack.c.l.b16 %v1183
    %v1791 = vunpack.c.h.b16 %v1183
    %v1792 = vunpack.c.l.b16 %v1184
    %v1793 = vunpack.c.h.b16 %v1184
    %v1794 = vunpack.c.l.b16 %v1185
    %v1795 = vunpack.c.h.b16 %v1185
    %v1796 = vunpack.c.l.b16 %v1186
    %v1797 = vunpack.c.h.b16 %v1186
    %v1798 = vunpack.c.l.b16 %v1187
    %v1799 = vunpack.c.h.b16 %v1187
    %v1800 = vunpack.c.l.b16 %v1188
    %v1801 = vunpack.c.h.b16 %v1188
    %v1802 = vunpack.c.l.b16 %v1189
    %v1803 = vunpack.c.h.b16 %v1189
    %v1804 = vunpack.c.l.b16 %v1190
    %v1805 = vunpack.c.h.b16 %v1190
    %v1806 = vunpack.c.l.b16 %v1191
    %v1807 = vunpack.c.h.b16 %v1191
    %v1808 = vunpack.c.l.b16 %v1192
    %v1809 = vunpack.c.h.b16 %v1192
    %v1810 = vunpack.c.l.b16 %v1193
    %v1811 = vunpack.c.h.b16 %v1193
    %v1812 = vunpack.c.l.b16 %v1194
    %v1813 = vunpack.c.h.b16 %v1194
    %v1814 = vunpack.c.l.b16 %v1195
    %v1815 = vunpack.c.h.b16 %v1195
    %v1816 = vunpack.c.l.b16 %v1196
    %v1817 = vunpack.c.h.b16 %v1196
    %v1818 = vunpack.c.l.b16 %v1197
    %v1819 = vunpack.c.h.b16 %v1197
    %v1820 = vunpack.c.l.b16 %v1198
    %v1821 = vunpack.c.h.b16 %v1198
    %v1822 = vunpack.c.l.b16 %v1199
    %v1823 = vunpack.c.h.b16 %v1199
    %v1824 = vunpack.c.l.b16 %v1200
    %v1825 = vunpack.c.h.b16 %v1200
    %v1826 = vunpack.c.l.b16 %v1201
    %v1827 = vunpack.c.h.b16 %v1201
    %v1828 = vunpack.c.l.b16 %v1202
    %v1829 = vunpack.c.h.b16 %v1202
    %v1830 = vunpack.c.l.b16 %v1203
    %v1831 = vunpack.c.h.b16 %v1203
    %v1832 = vunpack.c.l.b16 %v1204
    %v1833 = vunpack.c.h.b16 %v1204
    %v1834 = vunpack.c.l.b16 %v1205
    %v1835 = vunpack.c.h.b16 %v1205
    %v1836 = vunpack.c.l.b16 %v1206
    %v1837 = vunpack.c.h.b16 %v1206
    %v1838 = vunpack.c.l.b16 %v1207
    %v1839 = vunpack.c.h.b16 %v1207
    %v1840 = vunpack.c.l.b16 %v1208
    %v1841 = vunpack.c.h.b16 %v1208
    %v1842 = vunpack.c.l.b16 %v1209
    %v1843 = vunpack.c.h.b16 %v1209
    %v1844 = vunpack.c.l.b16 %v1210
    %v1845 = vunpack.c.h.b16 %v1210
    %v1846 = vunpack.c.l.b16 %v1211
    %v1847 = vunpack.c.h.b16 %v1211
    %v1848 = vunpack.c.l.b16 %v1212
    %v1849 = vunpack.c.h.b16 %v1212
    %v1850 = vunpack.c.l.b16 %v1213
    %v1851 = vunpack.c.h.b16 %v1213
    %v1852 = vunpack.c.l.b16 %v1214
    %v1853 = vunpack.c.h.b16 %v1214
    %v1854 = vunpack.c.l.b16 %v1215
    %v1855 = vunpack.c.h.b16 %v1215
    %v1856 = vunpack.c.l.b16 %v1216
    %v1857 = vunpack.c.h.b16 %v1216
    %v1858 = vunpack.c.l.b16 %v1217
    %v1859 = vunpack.c.h.b16 %v1217
    %v1860 = vunpack.c.l.b16 %v1218
    %v1861 = vunpack.c.h.b16 %v1218
    %v1862 = vunpack.c.l.b16 %v1219
    %v1863 = vunpack.c.h.b16 %v1219
    %v1864 = vunpack.c.l.b16 %v1220
    %v1865 = vunpack.c.h.b16 %v1220
    %v1866 = vunpack.c.l.b16 %v1221
    %v1867 = vunpack.c.h.b16 %v1221
    %v1868 = vunpack.c.l.b16 %v1222
    %v1869 = vunpack.c.h.b16 %v1222
    %v1870 = vunpack.c.l.b16 %v1223
    %v1871 = vunpack.c.h.b16 %v1223
    %v1872 = vunpack.c.l.b16 %v1224
    %v1873 = vunpack.c.h.b16 %v1224
    %v1874 = vunpack.c.l.b16 %v1225
    %v1875 = vunpack.c.h.b16 %v1225
    %v1876 = vunpack.c.l.b16 %v1226
    %v1877 = vunpack.c.h.b16 %v1226
    %v1878 = vunpack.c.l.b16 %v1227
    %v1879 = vunpack.c.h.b16 %v1227
    %v1880 = vunpack.c.l.b16 %v1228
    %v1881 = vunpack.c.h.b16 %v1228
    %v1882 = vunpack.c.l.b16 %v1229
    %v1883 = vunpack.c.h.b16 %v1229
    %v1884 = vunpack.c.l.b16 %v1230
    %v1885 = vunpack.c.h.b16 %v1230
    %v1886 = vunpack.c.l.b16 %v1231
    %v1887 = vunpack.c.h.b16 %v1231
    %v1888 = vunpack.c.l.b16 %v1232
    %v1889 = vunpack.c.h.b16 %v1232
    %v1890 = vunpack.c.l.b16 %v1233
    %v1891 = vunpack.c.h.b16 %v1233
    %v1892 = vunpack.c.l.b16 %v1234
    %v1893 = vunpack.c.h.b16 %v1234
    %v1894 = vunpack.c.l.b16 %v1235
    %v1895 = vunpack.c.h.b16 %v1235
    %v1896 = vunpack.c.l.b16 %v1236
    %v1897 = vunpack.c.h.b16 %v1236
    %v1898 = vunpack.c.l.b16 %v1237
    %v1899 = vunpack.c.h.b16 %v1237
    %v1900 = vunpack.c.l.b16 %v1238
    %v1901 = vunpack.c.h.b16 %v1238
    %v1902 = vunpack.c.l.b16 %v1239
    %v1903 = vunpack.c.h.b16 %v1239
    %v1904 = vunpack.c.l.b16 %v1240
    %v1905 = vunpack.c.h.b16 %v1240
    %v1906 = vunpack.c.l.b16 %v1241
    %v1907 = vunpack.c.h.b16 %v1241
    %v1908 = vunpack.c.l.b16 %v1242
    %v1909 = vunpack.c.h.b16 %v1242
    %v1910 = vunpack.c.l.b16 %v1243
    %v1911 = vunpack.c.h.b16 %v1243
    %v1912 = vunpack.c.l.b16 %v1244
    %v1913 = vunpack.c.h.b16 %v1244
    %v1914 = vunpack.c.l.b16 %v1245
    %v1915 = vunpack.c.h.b16 %v1245
    %v1916 = vunpack.c.l.b16 %v1246
    %v1917 = vunpack.c.h.b16 %v1246
    %v1918 = vunpack.c.l.b16 %v1247
    %v1919 = vunpack.c.h.b16 %v1247
    %v1920 = vunpack.c.l.b16 %v1248
    %v1921 = vunpack.c.h.b16 %v1248
    %v1922 = vunpack.c.l.b16 %v1249
    %v1923 = vunpack.c.h.b16 %v1249
    %v1924 = vunpack.c.l.b16 %v1250
    %v1925 = vunpack.c.h.b16 %v1250
    %v1926 = vunpack.c.l.b16 %v1251
    %v1927 = vunpack.c.h.b16 %v1251
    %v1928 = vunpack.c.l.b16 %v1252
    %v1929 = vunpack.c.h.b16 %v1252
    %v1930 = vunpack.c.l.b16 %v1253
    %v1931 = vunpack.c.h.b16 %v1253
    %v1932 = vunpack.c.l.b16 %v1254
    %v1933 = vunpack.c.h.b16 %v1254
    %v1934 = vunpack.c.l.b16 %v1255
    %v1935 = vunpack.c.h.b16 %v1255
    %v1936 = vunpack.c.l.b16 %v1256
    %v1937 = vunpack.c.h.b16 %v1256
    %v1938 = vunpack.c.l.b16 %v1257
    %v1939 = vunpack.c.h.b16 %v1257
    %v1940 = vunpack.c.l.b16 %v1258
    %v1941 = vunpack.c.h.b16 %v1258
    %v1942 = vunpack.c.l.b16 %v1259
    %v1943 = vunpack.c.h.b16 %v1259
    %v1944 = vunpack.c.l.b16 %v1260
    %v1945 = vunpack.c.h.b16 %v1260
    %v1946 = vunpack.c.l.b16 %v1261
    %v1947 = vunpack.c.h.b16 %v1261
    %v1948 = vunpack.c.l.b16 %v1262
    %v1949 = vunpack.c.h.b16 %v1262
    %v1950 = vunpack.c.l.b16 %v1263
    %v1951 = vunpack.c.h.b16 %v1263
    %v1952 = vunpack.c.l.b16 %v1264
    %v1953 = vunpack.c.h.b16 %v1264
    %v1954 = vunpack.c.l.b16 %v1265
    %v1955 = vunpack.c.h.b16 %v1265
    %v1956 = vunpack.c.l.b16 %v1266
    %v1957 = vunpack.c.h.b16 %v1266
    %v1958 = vunpack.c.l.b16 %v1267
    %v1959 = vunpack.c.h.b16 %v1267
    %v1960 = vunpack.c.l.b16 %v1268
    %v1961 = vunpack.c.h.b16 %v1268
    %v1962 = vunpack.c.l.b16 %v1269
    %v1963 = vunpack.c.h.b16 %v1269
    %v1964 = vunpack.c.l.b16 %v1270
    %v1965 = vunpack.c.h.b16 %v1270
    %v1966 = vunpack.c.l.b16 %v1271
    %v1967 = vunpack.c.h.b16 %v1271
    %v1968 = vunpack.c.l.b16 %v1272
    %v1969 = vunpack.c.h.b16 %v1272
    %v1970 = vunpack.c.l.b16 %v1273
    %v1971 = vunpack.c.h.b16 %v1273
    %v1972 = vunpack.c.l.b16 %v1274
    %v1973 = vunpack.c.h.b16 %v1274
    %v1974 = vunpack.c.l.b16 %v1275
    %v1975 = vunpack.c.h.b16 %v1275
    %v1976 = vunpack.c.l.b16 %v1276
    %v1977 = vunpack.c.h.b16 %v1276
    %v1978 = vunpack.c.l.b16 %v1277
    %v1979 = vunpack.c.h.b16 %v1277
    %v1980 = vunpack.c.l.b16 %v1278
    %v1981 = vunpack.c.h.b16 %v1278
    %v1982 = vunpack.c.l.b16 %v1279
    %v1983 = vunpack.c.h.b16 %v1279
    %v1984 = vunpack.c.l.b16 %v1280
    %v1985 = vunpack.c.h.b16 %v1280
    %v1986 = vunpack.c.l.b16 %v1281
    %v1987 = vunpack.c.h.b16 %v1281
    %v1988 = vunpack.c.l.b16 %v1282
    %v1989 = vunpack.c.h.b16 %v1282
    %v1990 = vunpack.c.l.b16 %v1283
    %v1991 = vunpack.c.h.b16 %v1283
    %v1992 = vunpack.c.l.b16 %v1284
    %v1993 = vunpack.c.h.b16 %v1284
    %v1994 = vunpack.c.l.b16 %v1285
    %v1995 = vunpack.c.h.b16 %v1285
    %v1996 = vunpack.c.l.b16 %v1286
    %v1997 = vunpack.c.h.b16 %v1286
    %v1998 = vunpack.c.l.b16 %v1287
    %v1999 = vunpack.c.h.b16 %v1287
    %v2000 = vunpack.c.l.b16 %v1288
    %v2001 = vunpack.c.h.b16 %v1288
    %v2002 = vunpack.c.l.b16 %v1289
    %v2003 = vunpack.c.h.b16 %v1289
    %v2004 = vunpack.c.l.b16 %v1290
    %v2005 = vunpack.c.h.b16 %v1290
    %v2006 = vunpack.c.l.b16 %v1291
    %v2007 = vunpack.c.h.b16 %v1291
    %v2008 = vunpack.c.l.b16 %v1292
    %v2009 = vunpack.c.h.b16 %v1292
    %v2010 = vunpack.c.l.b16 %v1293
    %v2011 = vunpack.c.h.b16 %v1293
    %v2012 = vunpack.c.l.b16 %v1294
    %v2013 = vunpack.c.h.b16 %v1294
    %v2014 = vunpack.c.l.b16 %v1295
    %v2015 = vunpack.c.h.b16 %v1295
    %v2016 = vunpack.c.l.b16 %v1296
    %v2017 = vunpack.c.h.b16 %v1296
    %v2018 = vunpack.c.l.b16 %v1297
    %v2019 = vunpack.c.h.b16 %v1297
    %v2020 = vunpack.c.l.b16 %v1298
    %v2021 = vunpack.c.h.b16 %v1298
    %v2022 = vunpack.c.l.b16 %v1299
    %v2023 = vunpack.c.h.b16 %v1299
    %v2024 = vunpack.c.l.b16 %v1300
    %v2025 = vunpack.c.h.b16 %v1300
    %v2026 = vunpack.c.l.b16 %v1301
    %v2027 = vunpack.c.h.b16 %v1301
    %v2028 = vunpack.c.l.b16 %v1302
    %v2029 = vunpack.c.h.b16 %v1302
    %v2030 = vunpack.c.l.b16 %v1303
    %v2031 = vunpack.c.h.b16 %v1303
    %v2032 = vunpack.c.l.b16 %v1304
    %v2033 = vunpack.c.h.b16 %v1304
    %v2034 = vunpack.c.l.b16 %v1305
    %v2035 = vunpack.c.h.b16 %v1305
    %v2036 = vunpack.c.l.b16 %v1306
    %v2037 = vunpack.c.h.b16 %v1306
    %v2038 = vunpack.c.l.b16 %v1307
    %v2039 = vunpack.c.h.b16 %v1307
    %v2040 = vunpack.c.l.b16 %v1308
    %v2041 = vunpack.c.h.b16 %v1308
    %v2042 = vunpack.c.l.b16 %v1309
    %v2043 = vunpack.c.h.b16 %v1309
    %v2044 = vunpack.c.l.b16 %v1310
    %v2045 = vunpack.c.h.b16 %v1310
    %v2046 = vunpack.c.l.b16 %v1311
    %v2047 = vunpack.c.h.b16 %v1311
    %v2048 = vunpack.c.l.b16 %v1312
    %v2049 = vunpack.c.h.b16 %v1312
    %v2050 = vunpack.c.l.b16 %v1313
    %v2051 = vunpack.c.h.b16 %v1313
    %v2052 = vunpack.c.l.b16 %v1314
    %v2053 = vunpack.c.h.b16 %v1314
    %v2054 = vunpack.c.l.b16 %v1315
    %v2055 = vunpack.c.h.b16 %v1315
    %v2056 = vunpack.c.l.b16 %v1316
    %v2057 = vunpack.c.h.b16 %v1316
    %v2058 = vunpack.c.l.b16 %v1317
    %v2059 = vunpack.c.h.b16 %v1317
    %v2060 = vunpack.c.l.b16 %v1318
    %v2061 = vunpack.c.h.b16 %v1318
    %v2062 = vunpack.c.l.b16 %v1319
    %v2063 = vunpack.c.h.b16 %v1319
    %v2064 = vunpack.c.l.b16 %v1320
    %v2065 = vunpack.c.h.b16 %v1320
    %v2066 = vunpack.c.l.b16 %v1321
    %v2067 = vunpack.c.h.b16 %v1321
    %v2068 = vunpack.c.l.b16 %v1322
    %v2069 = vunpack.c.h.b16 %v1322
    %v2070 = vunpack.c.l.b16 %v1323
    %v2071 = vunpack.c.h.b16 %v1323
    %v2072 = vunpack.c.l.b16 %v1324
    %v2073 = vunpack.c.h.b16 %v1324
    %v2074 = vunpack.c.l.b16 %v1325
    %v2075 = vunpack.c.h.b16 %v1325
    %v2076 = vunpack.c.l.b16 %v1326
    %v2077 = vunpack.c.h.b16 %v1326
    %v2078 = vunpack.c.l.b16 %v1327
    %v2079 = vunpack.c.h.b16 %v1327
    %v2080 = vunpack.c.l.b16 %v1328
    %v2081 = vunpack.c.h.b16 %v1328
    %v2082 = vunpack.c.l.b16 %v1329
    %v2083 = vunpack.c.h.b16 %v1329
    %v2084 = vunpack.c.l.b16 %v1330
    %v2085 = vunpack.c.h.b16 %v1330
    %v2086 = vunpack.c.l.b16 %v1331
    %v2087 = vunpack.c.h.b16 %v1331
    %v2088 = vunpack.c.l.b16 %v1332
    %v2089 = vunpack.c.h.b16 %v1332
    %v2090 = vunpack.c.l.b16 %v1333
    %v2091 = vunpack.c.h.b16 %v1333
    %v2092 = vunpack.c.l.b16 %v1334
    %v2093 = vunpack.c.h.b16 %v1334
    %v2094 = vunpack.c.l.b16 %v1335
    %v2095 = vunpack.c.h.b16 %v1335
    %v2096 = vunpack.c.l.b16 %v1336
    %v2097 = vunpack.c.h.b16 %v1336
    %v2098 = vunpack.c.l.b16 %v1337
    %v2099 = vunpack.c.h.b16 %v1337
    %v2100 = vunpack.c.l.b16 %v1338
    %v2101 = vunpack.c.h.b16 %v1338
    %v2102 = vunpack.c.l.b16 %v1339
    %v2103 = vunpack.c.h.b16 %v1339
    %v2104 = vunpack.c.l.b16 %v1340
    %v2105 = vunpack.c.h.b16 %v1340
    %v2106 = vunpack.c.l.b16 %v1341
    %v2107 = vunpack.c.h.b16 %v1341
    %v2108 = vunpack.c.l.b16 %v1342
    %v2109 = vunpack.c.h.b16 %v1342
    %v2110 = vunpack.c.l.b16 %v1343
    %v2111 = vunpack.c.h.b16 %v1343
    %v2112 = vunpack.c.l.b16 %v1344
    %v2113 = vunpack.c.h.b16 %v1344
    %v2114 = vunpack.c.l.b16 %v1345
    %v2115 = vunpack.c.h.b16 %v1345
    %v2116 = vunpack.c.l.b16 %v1346
    %v2117 = vunpack.c.h.b16 %v1346
    %v2118 = vunpack.c.l.b16 %v1347
    %v2119 = vunpack.c.h.b16 %v1347
    %v2120 = vunpack.c.l.b16 %v1348
    %v2121 = vunpack.c.h.b16 %v1348
    %v2122 = vunpack.c.l.b16 %v1349
    %v2123 = vunpack.c.h.b16 %v1349
    %v2124 = vunpack.c.l.b16 %v1350
    %v2125 = vunpack.c.h.b16 %v1350
    %v2126 = vunpack.c.l.b16 %v1351
    %v2127 = vunpack.c.h.b16 %v1351
    %v2128 = vunpack.c.l.b16 %v1352
    %v2129 = vunpack.c.h.b16 %v1352
    %v2130 = vunpack.c.l.b16 %v1353
    %v2131 = vunpack.c.h.b16 %v1353
    %v2132 = vunpack.c.l.b16 %v1354
    %v2133 = vunpack.c.h.b16 %v1354
    %v2134 = vunpack.c.l.b16 %v1355
    %v2135 = vunpack.c.h.b16 %v1355
    %v2136 = vunpack.c.l.b16 %v1356
    %v2137 = vunpack.c.h.b16 %v1356
    %v2138 = vunpack.c.l.b16 %v1357
    %v2139 = vunpack.c.h.b16 %v1357
    %v2140 = vunpack.c.l.b16 %v1358
    %v2141 = vunpack.c.h.b16 %v1358
    %v2142 = vunpack.c.l.b16 %v1359
    %v2143 = vunpack.c.h.b16 %v1359
    %v2144 = vunpack.c.l.b16 %v1360
    %v2145 = vunpack.c.h.b16 %v1360
    %v2146 = vunpack.c.l.b16 %v1361
    %v2147 = vunpack.c.h.b16 %v1361
    %v2148 = vunpack.c.l.b16 %v1362
    %v2149 = vunpack.c.h.b16 %v1362
    %v2150 = vunpack.c.l.b16 %v1363
    %v2151 = vunpack.c.h.b16 %v1363
    %v2152 = vunpack.c.l.b16 %v1364
    %v2153 = vunpack.c.h.b16 %v1364
    %v2154 = vunpack.c.l.b16 %v1365
    %v2155 = vunpack.c.h.b16 %v1365
    %v2156 = vpack.c.b16 %v1648, %v1644
    %v2157 = vpack.c.b16 %v1649, %v1645
    %v2158 = vpack.c.b16 %v1650, %v1646
    %v2159 = vpack.c.b16 %v1651, %v1647
    %v2160 = vpack.c.b16 %v1656, %v1652
    %v2161 = vpack.c.b16 %v1657, %v1653
    %v2162 = vpack.c.b16 %v1658, %v1654
    %v2163 = vpack.c.b16 %v1659, %v1655
    %v2164 = vpack.c.b16 %v1664, %v1660
    %v2165 = vpack.c.b16 %v1665, %v1661
    %v2166 = vpack.c.b16 %v1666, %v1662
    %v2167 = vpack.c.b16 %v1667, %v1663
    %v2168 = vpack.c.b16 %v1672, %v1668
    %v2169 = vpack.c.b16 %v1673, %v1669
    %v2170 = vpack.c.b16 %v1674, %v1670
    %v2171 = vpack.c.b16 %v1675, %v1671
    %v2172 = vpack.c.b16 %v1680, %v1676
    %v2173 = vpack.c.b16 %v1681, %v1677
    %v2174 = vpack.c.b16 %v1682, %v1678
    %v2175 = vpack.c.b16 %v1683, %v1679
    %v2176 = vpack.c.b16 %v1688, %v1684
    %v2177 = vpack.c.b16 %v1689, %v1685
    %v2178 = vpack.c.b16 %v1690, %v1686
    %v2179 = vpack.c.b16 %v1691, %v1687
    %v2180 = vpack.c.b16 %v1696, %v1692
    %v2181 = vpack.c.b16 %v1697, %v1693
    %v2182 = vpack.c.b16 %v1698, %v1694
    %v2183 = vpack.c.b16 %v1699, %v1695
    %v2184 = vpack.c.b16 %v1704, %v1700
    %v2185 = vpack.c.b16 %v1705, %v1701
    %v2186 = vpack.c.b16 %v1706, %v1702
    %v2187 = vpack.c.b16 %v1707, %v1703
    %v2188 = vpack.c.b16 %v1712, %v1708
    %v2189 = vpack.c.b16 %v1713, %v1709
    %v2190 = vpack.c.b16 %v1714, %v1710
    %v2191 = vpack.c.b16 %v1715, %v1711
    %v2192 = vpack.c.b16 %v1720, %v1716
    %v2193 = vpack.c.b16 %v1721, %v1717
    %v2194 = vpack.c.b16 %v1722, %v1718
    %v2195 = vpack.c.b16 %v1723, %v1719
    %v2196 = vpack.c.b16 %v1728, %v1724
    %v2197 = vpack.c.b16 %v1729, %v1725
    %v2198 = vpack.c.b16 %v1730, %v1726
    %v2199 = vpack.c.b16 %v1731, %v1727
    %v2200 = vpack.c.b16 %v1736, %v1732
    %v2201 = vpack.c.b16 %v1737, %v1733
    %v2202 = vpack.c.b16 %v1738, %v1734
    %v2203 = vpack.c.b16 %v1739, %v1735
    %v2204 = vpack.c.b16 %v1744, %v1740
    %v2205 = vpack.c.b16 %v1745, %v1741
    %v2206 = vpack.c.b16 %v1746, %v1742
    %v2207 = vpack.c.b16 %v1747, %v1743
    %v2208 = vpack.c.b16 %v1752, %v1748
    %v2209 = vpack.c.b16 %v1753, %v1749
    %v2210 = vpack.c.b16 %v1754, %v1750
    %v2211 = vpack.c.b16 %v1755, %v1751
    %v2212 = vpack.c.b16 %v1760, %v1756
    %v2213 = vpack.c.b16 %v1761, %v1757
    %v2214 = vpack.c.b16 %v1762, %v1758
    %v2215 = vpack.c.b16 %v1763, %v1759
    %v2216 = vpack.c.b16 %v1768, %v1764
    %v2217 = vpack.c.b16 %v1769, %v1765
    %v2218 = vpack.c.b16 %v1770, %v1766
    %v2219 = vpack.c.b16 %v1771, %v1767
    %v2220 = vpack.c.b16 %v1776, %v1772
    %v2221 = vpack.c.b16 %v1777, %v1773
    %v2222 = vpack.c.b16 %v1778, %v1774
    %v2223 = vpack.c.b16 %v1779, %v1775
    %v2224 = vpack.c.b16 %v1784, %v1780
    %v2225 = vpack.c.b16 %v1785, %v1781
    %v2226 = vpack.c.b16 %v1786, %v1782
    %v2227 = vpack.c.b16 %v1787, %v1783
    %v2228 = vpack.c.b16 %v1792, %v1788
    %v2229 = vpack.c.b16 %v1793, %v1789
    %v2230 = vpack.c.b16 %v1794, %v1790
    %v2231 = vpack.c.b16 %v1795, %v1791
    %v2232 = vpack.c.b16 %v1800, %v1796
    %v2233 = vpack.c.b16 %v1801, %v1797
    %v2234 = vpack.c.b16 %v1802, %v1798
    %v2235 = vpack.c.b16 %v1803, %v1799
    %v2236 = vpack.c.b16 %v1808, %v1804
    %v2237 = vpack.c.b16 %v1809, %v1805
    %v2238 = vpack.c.b16 %v1810, %v1806
    %v2239 = vpack.c.b16 %v1811, %v1807
    %v2240 = vpack.c.b16 %v1816, %v1812
    %v2241 = vpack.c.b16 %v1817, %v1813
    %v2242 = vpack.c.b16 %v1818, %v1814
    %v2243 = vpack.c.b16 %v1819, %v1815
    %v2244 = vpack.c.b16 %v1824, %v1820
    %v2245 = vpack.c.b16 %v1825, %v1821
    %v2246 = vpack.c.b16 %v1826, %v1822
    %v2247 = vpack.c.b16 %v1827, %v1823
    %v2248 = vpack.c.b16 %v1832, %v1828
    %v2249 = vpack.c.b16 %v1833, %v1829
    %v2250 = vpack.c.b16 %v1834, %v1830
    %v2251 = vpack.c.b16 %v1835, %v1831
    %v2252 = vpack.c.b16 %v1840, %v1836
    %v2253 = vpack.c.b16 %v1841, %v1837
    %v2254 = vpack.c.b16 %v1842, %v1838
    %v2255 = vpack.c.b16 %v1843, %v1839
    %v2256 = vpack.c.b16 %v1848, %v1844
    %v2257 = vpack.c.b16 %v1849, %v1845
    %v2258 = vpack.c.b16 %v1850, %v1846
    %v2259 = vpack.c.b16 %v1851, %v1847
    %v2260 = vpack.c.b16 %v1856, %v1852
    %v2261 = vpack.c.b16 %v1857, %v1853
    %v2262 = vpack.c.b16 %v1858, %v1854
    %v2263 = vpack.c.b16 %v1859, %v1855
    %v2264 = vpack.c.b16 %v1864, %v1860
    %v2265 = vpack.c.b16 %v1865, %v1861
    %v2266 = vpack.c.b16 %v1866, %v1862
    %v2267 = vpack.c.b16 %v1867, %v1863
    %v2268 = vpack.c.b16 %v1872, %v1868
    %v2269 = vpack.c.b16 %v1873, %v1869
    %v2270 = vpack.c.b16 %v1874, %v1870
    %v2271 = vpack.c.b16 %v1875, %v1871
    %v2272 = vpack.c.b16 %v1880, %v1876
    %v2273 = vpack.c.b16 %v1881, %v1877
    %v2274 = vpack.c.b16 %v1882, %v1878
    %v2275 = vpack.c.b16 %v1883, %v1879
    %v2276 = vpack.c.b16 %v1888, %v1884
    %v2277 = vpack.c.b16 %v1889, %v1885
    %v2278 = vpack.c.b16 %v1890, %v1886
    %v2279 = vpack.c.b16 %v1891, %v1887
    %v2280 = vpack.c.b16 %v1896, %v1892
    %v2281 = vpack.c.b16 %v1897, %v1893
    %v2282 = vpack.c.b16 %v1898, %v1894
    %v2283 = vpack.c.b16 %v1899, %v1895
    %v2284 = vpack.c.b16 %v1904, %v1900
    %v2285 = vpack.c.b16 %v1905, %v1901
    %v2286 = vpack.c.b16 %v1906, %v1902
    %v2287 = vpack.c.b16 %v1907, %v1903
    %v2288 = vpack.c.b16 %v1912, %v1908
    %v2289 = vpack.c.b16 %v1913, %v1909
    %v2290 = vpack.c.b16 %v1914, %v1910
    %v2291 = vpack.c.b16 %v1915, %v1911
    %v2292 = vpack.c.b16 %v1920, %v1916
    %v2293 = vpack.c.b16 %v1921, %v1917
    %v2294 = vpack.c.b16 %v1922, %v1918
    %v2295 = vpack.c.b16 %v1923, %v1919
    %v2296 = vpack.c.b16 %v1928, %v1924
    %v2297 = vpack.c.b16 %v1929, %v1925
    %v2298 = vpack.c.b16 %v1930, %v1926
    %v2299 = vpack.c.b16 %v1931, %v1927
    %v2300 = vpack.c.b16 %v1936, %v1932
    %v2301 = vpack.c.b16 %v1937, %v1933
    %v2302 = vpack.c.b16 %v1938, %v1934
    %v2303 = vpack.c.b16 %v1939, %v1935
    %v2304 = vpack.c.b16 %v1944, %v1940
    %v2305 = vpack.c.b16 %v1945, %v1941
    %v2306 = vpack.c.b16 %v1946, %v1942
    %v2307 = vpack.c.b16 %v1947, %v1943
    %v2308 = vpack.c.b16 %v1952, %v1948
    %v2309 = vpack.c.b16 %v1953, %v1949
    %v2310 = vpack.c.b16 %v1954, %v1950
    %v2311 = vpack.c.b16 %v1955, %v1951
    %v2312 = vpack.c.b16 %v1960, %v1956
    %v2313 = vpack.c.b16 %v1961, %v1957
    %v2314 = vpack.c.b16 %v1962, %v1958
    %v2315 = vpack.c.b16 %v1963, %v1959
    %v2316 = vpack.c.b16 %v1968, %v1964
    %v2317 = vpack.c.b16 %v1969, %v1965
    %v2318 = vpack.c.b16 %v1970, %v1966
    %v2319 = vpack.c.b16 %v1971, %v1967
    %v2320 = vpack.c.b16 %v1976, %v1972
    %v2321 = vpack.c.b16 %v1977, %v1973
    %v2322 = vpack.c.b16 %v1978, %v1974
    %v2323 = vpack.c.b16 %v1979, %v1975
    %v2324 = vpack.c.b16 %v1984, %v1980
    %v2325 = vpack.c.b16 %v1985, %v1981
    %v2326 = vpack.c.b16 %v1986, %v1982
    %v2327 = vpack.c.b16 %v1987, %v1983
    %v2328 = vpack.c.b16 %v1992, %v1988
    %v2329 = vpack.c.b16 %v1993, %v1989
    %v2330 = vpack.c.b16 %v1994, %v1990
    %v2331 = vpack.c.b16 %v1995, %v1991
    %v2332 = vpack.c.b16 %v2000, %v1996
    %v2333 = vpack.c.b16 %v2001, %v1997
    %v2334 = vpack.c.b16 %v2002, %v1998
    %v2335 = vpack.c.b16 %v2003, %v1999
    %v2336 = vpack.c.b16 %v2008, %v2004
    %v2337 = vpack.c.b16 %v2009, %v2005
    %v2338 = vpack.c.b16 %v2010, %v2006
    %v2339 = vpack.c.b16 %v2011, %v2007
    %v2340 = vpack.c.b16 %v2016, %v2012
    %v2341 = vpack.c.b16 %v2017, %v2013
    %v2342 = vpack.c.b16 %v2018, %v2014
    %v2343 = vpack.c.b16 %v2019, %v2015
    %v2344 = vpack.c.b16 %v2024, %v2020
    %v2345 = vpack.c.b16 %v2025, %v2021
    %v2346 = vpack.c.b16 %v2026, %v2022
    %v2347 = vpack.c.b16 %v2027, %v2023
    %v2348 = vpack.c.b16 %v2032, %v2028
    %v2349 = vpack.c.b16 %v2033, %v2029
    %v2350 = vpack.c.b16 %v2034, %v2030
    %v2351 = vpack.c.b16 %v2035, %v2031
    %v2352 = vpack.c.b16 %v2040, %v2036
    %v2353 = vpack.c.b16 %v2041, %v2037
    %v2354 = vpack.c.b16 %v2042, %v2038
    %v2355 = vpack.c.b16 %v2043, %v2039
    %v2356 = vpack.c.b16 %v2048, %v2044
    %v2357 = vpack.c.b16 %v2049, %v2045
    %v2358 = vpack.c.b16 %v2050, %v2046
    %v2359 = vpack.c.b16 %v2051, %v2047
    %v2360 = vpack.c.b16 %v2056, %v2052
    %v2361 = vpack.c.b16 %v2057, %v2053
    %v2362 = vpack.c.b16 %v2058, %v2054
    %v2363 = vpack.c.b16 %v2059, %v2055
    %v2364 = vpack.c.b16 %v2064, %v2060
    %v2365 = vpack.c.b16 %v2065, %v2061
    %v2366 = vpack.c.b16 %v2066, %v2062
    %v2367 = vpack.c.b16 %v2067, %v2063
    %v2368 = vpack.c.b16 %v2072, %v2068
    %v2369 = vpack.c.b16 %v2073, %v2069
    %v2370 = vpack.c.b16 %v2074, %v2070
    %v2371 = vpack.c.b16 %v2075, %v2071
    %v2372 = vpack.c.b16 %v2080, %v2076
    %v2373 = vpack.c.b16 %v2081, %v2077
    %v2374 = vpack.c.b16 %v2082, %v2078
    %v2375 = vpack.c.b16 %v2083, %v2079
    %v2376 = vpack.c.b16 %v2088, %v2084
    %v2377 = vpack.c.b16 %v2089, %v2085
    %v2378 = vpack.c.b16 %v2090, %v2086
    %v2379 = vpack.c.b16 %v2091, %v2087
    %v2380 = vpack.c.b16 %v2096, %v2092
    %v2381 = vpack.c.b16 %v2097, %v2093
    %v2382 = vpack.c.b16 %v2098, %v2094
    %v2383 = vpack.c.b16 %v2099, %v2095
    %v2384 = vpack.c.b16 %v2104, %v2100
    %v2385 = vpack.c.b16 %v2105, %v2101
    %v2386 = vpack.c.b16 %v2106, %v2102
    %v2387 = vpack.c.b16 %v2107, %v2103
    %v2388 = vpack.c.b16 %v2112, %v2108
    %v2389 = vpack.c.b16 %v2113, %v2109
    %v2390 = vpack.c.b16 %v2114, %v2110
    %v2391 = vpack.c.b16 %v2115, %v2111
    %v2392 = vpack.c.b16 %v2120, %v2116
    %v2393 = vpack.c.b16 %v2121, %v2117
    %v2394 = vpack.c.b16 %v2122, %v2118
    %v2395 = vpack.c.b16 %v2123, %v2119
    %v2396 = vpack.c.b16 %v2128, %v2124
    %v2397 = vpack.c.b16 %v2129, %v2125
    %v2398 = vpack.c.b16 %v2130, %v2126
    %v2399 = vpack.c.b16 %v2131, %v2127
    %v2400 = vpack.c.b16 %v2136, %v2132
    %v2401 = vpack.c.b16 %v2137, %v2133
    %v2402 = vpack.c.b16 %v2138, %v2134
    %v2403 = vpack.c.b16 %v2139, %v2135
    %v2404 = vpack.c.b16 %v2144, %v2140
    %v2405 = vpack.c.b16 %v2145, %v2141
    %v2406 = vpack.c.b16 %v2146, %v2142
    %v2407 = vpack.c.b16 %v2147, %v2143
    %v2408 = vpack.c.b16 %v2152, %v2148
    %v2409 = vpack.c.b16 %v2153, %v2149
    %v2410 = vpack.c.b16 %v2154, %v2150
    %v2411 = vpack.c.b16 %v2155, %v2151
    %2668 = vmatprep.subr.bf16.mxu0 %v2157
    %2669 = vmatpush1.bf16.msra.mxu0 %v2156
    %2670 = vmatprep.subr.bf16.mxu0 %v2161
    %2671 = vmatpush1.bf16.msra.mxu0 %v2160
    %2672 = vmatprep.subr.bf16.mxu0 %v2165
    %2673 = vmatpush1.bf16.msra.mxu0 %v2164
    %2674 = vmatprep.subr.bf16.mxu0 %v2169
    %2675 = vmatpush1.bf16.msra.mxu0 %v2168
    %2676 = vmatprep.subr.bf16.mxu0 %v2173
    %2677 = vmatpush1.bf16.msra.mxu0 %v2172
    %2678 = vmatprep.subr.bf16.mxu0 %v2177
    %2679 = vmatpush1.bf16.msra.mxu0 %v2176
    %2680 = vmatprep.subr.bf16.mxu0 %v2181
    %2681 = vmatpush1.bf16.msra.mxu0 %v2180
    %2682 = vmatprep.subr.bf16.mxu0 %v2185
    %2683 = vmatpush1.bf16.msra.mxu0 %v2184
    %2684 = vmatprep.subr.bf16.mxu0 %v2189
    %2685 = vmatpush1.bf16.msra.mxu0 %v2188
    %2686 = vmatprep.subr.bf16.mxu0 %v2193
    %2687 = vmatpush1.bf16.msra.mxu0 %v2192
    %2688 = vmatprep.subr.bf16.mxu0 %v2197
    %2689 = vmatpush1.bf16.msra.mxu0 %v2196
    %2690 = vmatprep.subr.bf16.mxu0 %v2201
    %2691 = vmatpush1.bf16.msra.mxu0 %v2200
    %2692 = vmatprep.subr.bf16.mxu0 %v2205
    %2693 = vmatpush1.bf16.msra.mxu0 %v2204
    %2694 = vmatprep.subr.bf16.mxu0 %v2209
    %2695 = vmatpush1.bf16.msra.mxu0 %v2208
    %2696 = vmatprep.subr.bf16.mxu0 %v2213
    %2697 = vmatpush1.bf16.msra.mxu0 %v2212
    %2698 = vmatprep.subr.bf16.mxu0 %v2217
    %2699 = vmatpush1.bf16.msra.mxu0 %v2216
    %2700 = vmatprep.mubr.bf16.mxu0 %v1103
    %2701 = vmatmul.mubr.bf16.gmra.mrb[0].mxu0 %v1102
    %v2702 = vpop.f32.mrb[0].mxu0
    %v2703 = vadd.f32 %v1371, %v2702
    %v2704 = vpop.f32.mrb[0].mxu0
    %v2705 = vadd.f32 %v1375, %v2704
    %v2706 = vpop.f32.mrb[0].mxu0
    %v2707 = vpop.f32.mrb[0].mxu0
    %2708 = vdwg.mxu0
    %2709 = vmatprep.subr.bf16.mxu0 %v2221
    %2710 = vmatpush1.bf16.msra.mxu0 %v2220
    %2711 = vmatprep.subr.bf16.mxu0 %v2225
    %2712 = vmatpush1.bf16.msra.mxu0 %v2224
    %2713 = vmatprep.subr.bf16.mxu0 %v2229
    %2714 = vmatpush1.bf16.msra.mxu0 %v2228
    %2715 = vmatprep.subr.bf16.mxu0 %v2233
    %2716 = vmatpush1.bf16.msra.mxu0 %v2232
    %2717 = vmatprep.subr.bf16.mxu0 %v2237
    %2718 = vmatpush1.bf16.msra.mxu0 %v2236
    %2719 = vmatprep.subr.bf16.mxu0 %v2241
    %2720 = vmatpush1.bf16.msra.mxu0 %v2240
    %2721 = vmatprep.subr.bf16.mxu0 %v2245
    %2722 = vmatpush1.bf16.msra.mxu0 %v2244
    %2723 = vmatprep.subr.bf16.mxu0 %v2249
    %2724 = vmatpush1.bf16.msra.mxu0 %v2248
    %2725 = vmatprep.subr.bf16.mxu0 %v2253
    %2726 = vmatpush1.bf16.msra.mxu0 %v2252
    %2727 = vmatprep.subr.bf16.mxu0 %v2257
    %2728 = vmatpush1.bf16.msra.mxu0 %v2256
    %2729 = vmatprep.subr.bf16.mxu0 %v2261
    %2730 = vmatpush1.bf16.msra.mxu0 %v2260
    %2731 = vmatprep.subr.bf16.mxu0 %v2265
    %2732 = vmatpush1.bf16.msra.mxu0 %v2264
    %2733 = vmatprep.subr.bf16.mxu0 %v2269
    %2734 = vmatpush1.bf16.msra.mxu0 %v2268
    %2735 = vmatprep.subr.bf16.mxu0 %v2273
    %2736 = vmatpush1.bf16.msra.mxu0 %v2272
    %2737 = vmatprep.subr.bf16.mxu0 %v2277
    %2738 = vmatpush1.bf16.msra.mxu0 %v2276
    %2739 = vmatprep.subr.bf16.mxu0 %v2281
    %2740 = vmatpush1.bf16.msra.mxu0 %v2280
    %2741 = vmatprep.mubr.bf16.mxu0 %v1105
    %2742 = vmatmul.mubr.bf16.gmra.mrb[0].mxu0 %v1104
    %v2743 = vpop.f32.mrb[0].mxu0
    %v2744 = vadd.f32 %v2703, %v2743
    %v2745 = vpop.f32.mrb[0].mxu0
    %v2746 = vadd.f32 %v2705, %v2745
    %v2747 = vpop.f32.mrb[0].mxu0
    %v2748 = vpop.f32.mrb[0].mxu0
    %2749 = vdwg.mxu0
    %2750 = vmatprep.subr.bf16.mxu0 %v2285
    %2751 = vmatpush1.bf16.msra.mxu0 %v2284
    %2752 = vmatprep.subr.bf16.mxu0 %v2289
    %2753 = vmatpush1.bf16.msra.mxu0 %v2288
    %2754 = vmatprep.subr.bf16.mxu0 %v2293
    %2755 = vmatpush1.bf16.msra.mxu0 %v2292
    %2756 = vmatprep.subr.bf16.mxu0 %v2297
    %2757 = vmatpush1.bf16.msra.mxu0 %v2296
    %2758 = vmatprep.subr.bf16.mxu0 %v2301
    %2759 = vmatpush1.bf16.msra.mxu0 %v2300
    %2760 = vmatprep.subr.bf16.mxu0 %v2305
    %2761 = vmatpush1.bf16.msra.mxu0 %v2304
    %2762 = vmatprep.subr.bf16.mxu0 %v2309
    %2763 = vmatpush1.bf16.msra.mxu0 %v2308
    %2764 = vmatprep.subr.bf16.mxu0 %v2313
    %2765 = vmatpush1.bf16.msra.mxu0 %v2312
    %2766 = vmatprep.subr.bf16.mxu0 %v2317
    %2767 = vmatpush1.bf16.msra.mxu0 %v2316
    %2768 = vmatprep.subr.bf16.mxu0 %v2321
    %2769 = vmatpush1.bf16.msra.mxu0 %v2320
    %2770 = vmatprep.subr.bf16.mxu0 %v2325
    %2771 = vmatpush1.bf16.msra.mxu0 %v2324
    %2772 = vmatprep.subr.bf16.mxu0 %v2329
    %2773 = vmatpush1.bf16.msra.mxu0 %v2328
    %2774 = vmatprep.subr.bf16.mxu0 %v2333
    %2775 = vmatpush1.bf16.msra.mxu0 %v2332
    %2776 = vmatprep.subr.bf16.mxu0 %v2337
    %2777 = vmatpush1.bf16.msra.mxu0 %v2336
    %2778 = vmatprep.subr.bf16.mxu0 %v2341
    %2779 = vmatpush1.bf16.msra.mxu0 %v2340
    %2780 = vmatprep.subr.bf16.mxu0 %v2345
    %2781 = vmatpush1.bf16.msra.mxu0 %v2344
    %2782 = vmatprep.mubr.bf16.mxu0 %v1107
    %2783 = vmatmul.mubr.bf16.gmra.mrb[0].mxu0 %v1106
    %v2784 = vpop.f32.mrb[0].mxu0
    %v2785 = vadd.f32 %v2744, %v2784
    %v2786 = vpop.f32.mrb[0].mxu0
    %v2787 = vadd.f32 %v2746, %v2786
    %v2788 = vpop.f32.mrb[0].mxu0
    %v2789 = vpop.f32.mrb[0].mxu0
    %2790 = vdwg.mxu0
    %2791 = vmatprep.subr.bf16.mxu0 %v2349
    %2792 = vmatpush1.bf16.msra.mxu0 %v2348
    %2793 = vmatprep.subr.bf16.mxu0 %v2353
    %2794 = vmatpush1.bf16.msra.mxu0 %v2352
    %2795 = vmatprep.subr.bf16.mxu0 %v2357
    %2796 = vmatpush1.bf16.msra.mxu0 %v2356
    %2797 = vmatprep.subr.bf16.mxu0 %v2361
    %2798 = vmatpush1.bf16.msra.mxu0 %v2360
    %2799 = vmatprep.subr.bf16.mxu0 %v2365
    %2800 = vmatpush1.bf16.msra.mxu0 %v2364
    %2801 = vmatprep.subr.bf16.mxu0 %v2369
    %2802 = vmatpush1.bf16.msra.mxu0 %v2368
    %2803 = vmatprep.subr.bf16.mxu0 %v2373
    %2804 = vmatpush1.bf16.msra.mxu0 %v2372
    %2805 = vmatprep.subr.bf16.mxu0 %v2377
    %2806 = vmatpush1.bf16.msra.mxu0 %v2376
    %2807 = vmatprep.subr.bf16.mxu0 %v2381
    %2808 = vmatpush1.bf16.msra.mxu0 %v2380
    %2809 = vmatprep.subr.bf16.mxu0 %v2385
    %2810 = vmatpush1.bf16.msra.mxu0 %v2384
    %2811 = vmatprep.subr.bf16.mxu0 %v2389
    %2812 = vmatpush1.bf16.msra.mxu0 %v2388
    %2813 = vmatprep.subr.bf16.mxu0 %v2393
    %2814 = vmatpush1.bf16.msra.mxu0 %v2392
    %2815 = vmatprep.subr.bf16.mxu0 %v2397
    %2816 = vmatpush1.bf16.msra.mxu0 %v2396
    %2817 = vmatprep.subr.bf16.mxu0 %v2401
    %2818 = vmatpush1.bf16.msra.mxu0 %v2400
    %2819 = vmatprep.subr.bf16.mxu0 %v2405
    %2820 = vmatpush1.bf16.msra.mxu0 %v2404
    %2821 = vmatprep.subr.bf16.mxu0 %v2409
    %2822 = vmatpush1.bf16.msra.mxu0 %v2408
    %2823 = vmatprep.mubr.bf16.mxu0 %v1109
    %2824 = vmatmul.mubr.bf16.gmra.mrb[0].mxu0 %v1108
    %v2825 = vpop.f32.mrb[0].mxu0
    %v2826 = vadd.f32 %v2785, %v2825
    %v2827 = vpop.f32.mrb[0].mxu0
    %v2828 = vadd.f32 %v2787, %v2827
    %v2829 = vpop.f32.mrb[0].mxu0
    %v2830 = vpop.f32.mrb[0].mxu0
    %2831 = vdwg.mxu0
    %2832 = vmatprep.subr.bf16.mxu0 %v2159
    %2833 = vmatpush1.bf16.msra.mxu0 %v2158
    %2834 = vmatprep.subr.bf16.mxu0 %v2163
    %2835 = vmatpush1.bf16.msra.mxu0 %v2162
    %2836 = vmatprep.subr.bf16.mxu0 %v2167
    %2837 = vmatpush1.bf16.msra.mxu0 %v2166
    %2838 = vmatprep.subr.bf16.mxu0 %v2171
    %2839 = vmatpush1.bf16.msra.mxu0 %v2170
    %2840 = vmatprep.subr.bf16.mxu0 %v2175
    %2841 = vmatpush1.bf16.msra.mxu0 %v2174
    %2842 = vmatprep.subr.bf16.mxu0 %v2179
    %2843 = vmatpush1.bf16.msra.mxu0 %v2178
    %2844 = vmatprep.subr.bf16.mxu0 %v2183
    %2845 = vmatpush1.bf16.msra.mxu0 %v2182
    %2846 = vmatprep.subr.bf16.mxu0 %v2187
    %2847 = vmatpush1.bf16.msra.mxu0 %v2186
    %2848 = vmatprep.subr.bf16.mxu0 %v2191
    %2849 = vmatpush1.bf16.msra.mxu0 %v2190
    %2850 = vmatprep.subr.bf16.mxu0 %v2195
    %2851 = vmatpush1.bf16.msra.mxu0 %v2194
    %2852 = vmatprep.subr.bf16.mxu0 %v2199
    %2853 = vmatpush1.bf16.msra.mxu0 %v2198
    %2854 = vmatprep.subr.bf16.mxu0 %v2203
    %2855 = vmatpush1.bf16.msra.mxu0 %v2202
    %2856 = vmatprep.subr.bf16.mxu0 %v2207
    %2857 = vmatpush1.bf16.msra.mxu0 %v2206
    %2858 = vmatprep.subr.bf16.mxu0 %v2211
    %2859 = vmatpush1.bf16.msra.mxu0 %v2210
    %2860 = vmatprep.subr.bf16.mxu0 %v2215
    %2861 = vmatpush1.bf16.msra.mxu0 %v2214
    %2862 = vmatprep.subr.bf16.mxu0 %v2219
    %2863 = vmatpush1.bf16.msra.mxu0 %v2218
    %2864 = vmatprep.mubr.bf16.mxu0 %v1103
    %2865 = vmatmul.mubr.bf16.gmra.mrb[0].mxu0 %v1102
    %v2866 = vpop.f32.mrb[0].mxu0
    %v2867 = vadd.f32 %v1379, %v2866
    %v2868 = vpop.f32.mrb[0].mxu0
    %v2869 = vadd.f32 %v1383, %v2868
    %v2870 = vpop.f32.mrb[0].mxu0
    %v2871 = vpop.f32.mrb[0].mxu0
    %2872 = vdwg.mxu0
    %2873 = vmatprep.subr.bf16.mxu0 %v2223
    %2874 = vmatpush1.bf16.msra.mxu0 %v2222
    %2875 = vmatprep.subr.bf16.mxu0 %v2227
    %2876 = vmatpush1.bf16.msra.mxu0 %v2226
    %2877 = vmatprep.subr.bf16.mxu0 %v2231
    %2878 = vmatpush1.bf16.msra.mxu0 %v2230
    %2879 = vmatprep.subr.bf16.mxu0 %v2235
    %2880 = vmatpush1.bf16.msra.mxu0 %v2234
    %2881 = vmatprep.subr.bf16.mxu0 %v2239
    %2882 = vmatpush1.bf16.msra.mxu0 %v2238
    %2883 = vmatprep.subr.bf16.mxu0 %v2243
    %2884 = vmatpush1.bf16.msra.mxu0 %v2242
    %2885 = vmatprep.subr.bf16.mxu0 %v2247
    %2886 = vmatpush1.bf16.msra.mxu0 %v2246
    %2887 = vmatprep.subr.bf16.mxu0 %v2251
    %2888 = vmatpush1.bf16.msra.mxu0 %v2250
    %2889 = vmatprep.subr.bf16.mxu0 %v2255
    %2890 = vmatpush1.bf16.msra.mxu0 %v2254
    %2891 = vmatprep.subr.bf16.mxu0 %v2259
    %2892 = vmatpush1.bf16.msra.mxu0 %v2258
    %2893 = vmatprep.subr.bf16.mxu0 %v2263
    %2894 = vmatpush1.bf16.msra.mxu0 %v2262
    %2895 = vmatprep.subr.bf16.mxu0 %v2267
    %2896 = vmatpush1.bf16.msra.mxu0 %v2266
    %2897 = vmatprep.subr.bf16.mxu0 %v2271
    %2898 = vmatpush1.bf16.msra.mxu0 %v2270
    %2899 = vmatprep.subr.bf16.mxu0 %v2275
    %2900 = vmatpush1.bf16.msra.mxu0 %v2274
    %2901 = vmatprep.subr.bf16.mxu0 %v2279
    %2902 = vmatpush1.bf16.msra.mxu0 %v2278
    %2903 = vmatprep.subr.bf16.mxu0 %v2283
    %2904 = vmatpush1.bf16.msra.mxu0 %v2282
    %2905 = vmatprep.mubr.bf16.mxu0 %v1105
    %2906 = vmatmul.mubr.bf16.gmra.mrb[0].mxu0 %v1104
    %v2907 = vpop.f32.mrb[0].mxu0
    %v2908 = vadd.f32 %v2867, %v2907
    %v2909 = vpop.f32.mrb[0].mxu0
    %v2910 = vadd.f32 %v2869, %v2909
    %v2911 = vpop.f32.mrb[0].mxu0
    %v2912 = vpop.f32.mrb[0].mxu0
    %2913 = vdwg.mxu0
    %2914 = vmatprep.subr.bf16.mxu0 %v2287
    %2915 = vmatpush1.bf16.msra.mxu0 %v2286
    %2916 = vmatprep.subr.bf16.mxu0 %v2291
    %2917 = vmatpush1.bf16.msra.mxu0 %v2290
    %2918 = vmatprep.subr.bf16.mxu0 %v2295
    %2919 = vmatpush1.bf16.msra.mxu0 %v2294
    %2920 = vmatprep.subr.bf16.mxu0 %v2299
    %2921 = vmatpush1.bf16.msra.mxu0 %v2298
    %2922 = vmatprep.subr.bf16.mxu0 %v2303
    %2923 = vmatpush1.bf16.msra.mxu0 %v2302
    %2924 = vmatprep.subr.bf16.mxu0 %v2307
    %2925 = vmatpush1.bf16.msra.mxu0 %v2306
    %2926 = vmatprep.subr.bf16.mxu0 %v2311
    %2927 = vmatpush1.bf16.msra.mxu0 %v2310
    %2928 = vmatprep.subr.bf16.mxu0 %v2315
    %2929 = vmatpush1.bf16.msra.mxu0 %v2314
    %2930 = vmatprep.subr.bf16.mxu0 %v2319
    %2931 = vmatpush1.bf16.msra.mxu0 %v2318
    %2932 = vmatprep.subr.bf16.mxu0 %v2323
    %2933 = vmatpush1.bf16.msra.mxu0 %v2322
    %2934 = vmatprep.subr.bf16.mxu0 %v2327
    %2935 = vmatpush1.bf16.msra.mxu0 %v2326
    %2936 = vmatprep.subr.bf16.mxu0 %v2331
    %2937 = vmatpush1.bf16.msra.mxu0 %v2330
    %2938 = vmatprep.subr.bf16.mxu0 %v2335
    %2939 = vmatpush1.bf16.msra.mxu0 %v2334
    %2940 = vmatprep.subr.bf16.mxu0 %v2339
    %2941 = vmatpush1.bf16.msra.mxu0 %v2338
    %2942 = vmatprep.subr.bf16.mxu0 %v2343
    %2943 = vmatpush1.bf16.msra.mxu0 %v2342
    %2944 = vmatprep.subr.bf16.mxu0 %v2347
    %2945 = vmatpush1.bf16.msra.mxu0 %v2346
    %2946 = vmatprep.mubr.bf16.mxu0 %v1107
    %2947 = vmatmul.mubr.bf16.gmra.mrb[0].mxu0 %v1106
    %v2948 = vpop.f32.mrb[0].mxu0
    %v2949 = vadd.f32 %v2908, %v2948
    %v2950 = vpop.f32.mrb[0].mxu0
    %v2951 = vadd.f32 %v2910, %v2950
    %v2952 = vpop.f32.mrb[0].mxu0
    %v2953 = vpop.f32.mrb[0].mxu0
    %2954 = vdwg.mxu0
    %2955 = vmatprep.subr.bf16.mxu0 %v2351
    %2956 = vmatpush1.bf16.msra.mxu0 %v2350
    %2957 = vmatprep.subr.bf16.mxu0 %v2355
    %2958 = vmatpush1.bf16.msra.mxu0 %v2354
    %2959 = vmatprep.subr.bf16.mxu0 %v2359
    %2960 = vmatpush1.bf16.msra.mxu0 %v2358
    %2961 = vmatprep.subr.bf16.mxu0 %v2363
    %2962 = vmatpush1.bf16.msra.mxu0 %v2362
    %2963 = vmatprep.subr.bf16.mxu0 %v2367
    %2964 = vmatpush1.bf16.msra.mxu0 %v2366
    %2965 = vmatprep.subr.bf16.mxu0 %v2371
    %2966 = vmatpush1.bf16.msra.mxu0 %v2370
    %2967 = vmatprep.subr.bf16.mxu0 %v2375
    %2968 = vmatpush1.bf16.msra.mxu0 %v2374
    %2969 = vmatprep.subr.bf16.mxu0 %v2379
    %2970 = vmatpush1.bf16.msra.mxu0 %v2378
    %2971 = vmatprep.subr.bf16.mxu0 %v2383
    %2972 = vmatpush1.bf16.msra.mxu0 %v2382
    %2973 = vmatprep.subr.bf16.mxu0 %v2387
    %2974 = vmatpush1.bf16.msra.mxu0 %v2386
    %2975 = vmatprep.subr.bf16.mxu0 %v2391
    %2976 = vmatpush1.bf16.msra.mxu0 %v2390
    %2977 = vmatprep.subr.bf16.mxu0 %v2395
    %2978 = vmatpush1.bf16.msra.mxu0 %v2394
    %2979 = vmatprep.subr.bf16.mxu0 %v2399
    %2980 = vmatpush1.bf16.msra.mxu0 %v2398
    %2981 = vmatprep.subr.bf16.mxu0 %v2403
    %2982 = vmatpush1.bf16.msra.mxu0 %v2402
    %2983 = vmatprep.subr.bf16.mxu0 %v2407
    %2984 = vmatpush1.bf16.msra.mxu0 %v2406
    %2985 = vmatprep.subr.bf16.mxu0 %v2411
    %2986 = vmatpush1.bf16.msra.mxu0 %v2410
    %2987 = vmatprep.mubr.bf16.mxu0 %v1109
    %2988 = vmatmul.mubr.bf16.gmra.mrb[0].mxu0 %v1108
    %v2989 = vpop.f32.mrb[0].mxu0
    %v2990 = vadd.f32 %v2949, %v2989
    %v2991 = vpop.f32.mrb[0].mxu0
    %v2992 = vadd.f32 %v2951, %v2991
    %v2993 = vpop.f32.mrb[0].mxu0
    %v2994 = vpop.f32.mrb[0].mxu0
    %2995 = vdwg.mxu0
    %v2996 = vmax.f32 %v2826, 0.0
    %v2997 = vmax.f32 %v2828, 0.0
    %v2998 = vmax.f32 %v2990, 0.0
    %v2999 = vmax.f32 %v2992, 0.0
    %v3000 = vpack.c.bf16 %v2996, %v2996
    %v3001 = vpack.c.bf16 %v2997, %v2997
    %v3002 = vpack.c.bf16 %v2998, %v2998
    %v3003 = vpack.c.bf16 %v2999, %v2999
    %v3004 = vld [vmem:[#allocation10] sm:$0xf]
    %v3005 = vld [vmem:[#allocation10 + $0x4] sm:$0xf]
    %v3006 = vld [vmem:[#allocation10 + $0x8] sm:$0xf]
    %v3007 = vld [vmem:[#allocation10 + $0xc] sm:$0xf]
    %v3008 = vld [vmem:[#allocation10 + $0x10] sm:$0xf]
    %v3009 = vld [vmem:[#allocation10 + $0x14] sm:$0xf]
    %v3010 = vld [vmem:[#allocation10 + $0x18] sm:$0xf]
    %v3011 = vld [vmem:[#allocation10 + $0x1c] sm:$0xf]
    %v3012 = vld [vmem:[#allocation10 + $0x20] sm:$0xf]
    %v3013 = vld [vmem:[#allocation10 + $0x24] sm:$0xf]
    %v3014 = vld [vmem:[#allocation10 + $0x28] sm:$0xf]
    %v3015 = vld [vmem:[#allocation10 + $0x2c] sm:$0xf]
    %v3016 = vld [vmem:[#allocation10 + $0x30] sm:$0xf]
    %v3017 = vld [vmem:[#allocation10 + $0x34] sm:$0xf]
    %v3018 = vld [vmem:[#allocation10 + $0x38] sm:$0xf]
    %v3019 = vld [vmem:[#allocation10 + $0x3c] sm:$0xf]
    %v3020 = vld [vmem:[#allocation10 + $0x40] sm:$0xf]
    %v3021 = vld [vmem:[#allocation10 + $0x44] sm:$0xf]
    %v3022 = vld [vmem:[#allocation10 + $0x48] sm:$0xf]
    %v3023 = vld [vmem:[#allocation10 + $0x4c] sm:$0xf]
    %v3024 = vld [vmem:[#allocation10 + $0x50] sm:$0xf]
    %v3025 = vld [vmem:[#allocation10 + $0x54] sm:$0xf]
    %v3026 = vld [vmem:[#allocation10 + $0x58] sm:$0xf]
    %v3027 = vld [vmem:[#allocation10 + $0x5c] sm:$0xf]
    %v3028 = vld [vmem:[#allocation10 + $0x60] sm:$0xf]
    %v3029 = vld [vmem:[#allocation10 + $0x64] sm:$0xf]
    %v3030 = vld [vmem:[#allocation10 + $0x68] sm:$0xf]
    %v3031 = vld [vmem:[#allocation10 + $0x6c] sm:$0xf]
    %v3032 = vld [vmem:[#allocation10 + $0x70] sm:$0xf]
    %v3033 = vld [vmem:[#allocation10 + $0x74] sm:$0xf]
    %v3034 = vld [vmem:[#allocation10 + $0x78] sm:$0xf]
    %v3035 = vld [vmem:[#allocation10 + $0x7c] sm:$0xf]
    %v3036 = vld [vmem:[#allocation10 + $0x80] sm:$0xf]
    %v3037 = vld [vmem:[#allocation10 + $0x84] sm:$0xf]
    %v3038 = vld [vmem:[#allocation10 + $0x88] sm:$0xf]
    %v3039 = vld [vmem:[#allocation10 + $0x8c] sm:$0xf]
    %v3040 = vld [vmem:[#allocation10 + $0x90] sm:$0xf]
    %v3041 = vld [vmem:[#allocation10 + $0x94] sm:$0xf]
    %v3042 = vld [vmem:[#allocation10 + $0x98] sm:$0xf]
    %v3043 = vld [vmem:[#allocation10 + $0x9c] sm:$0xf]
    %v3044 = vld [vmem:[#allocation10 + $0xa0] sm:$0xf]
    %v3045 = vld [vmem:[#allocation10 + $0xa4] sm:$0xf]
    %v3046 = vld [vmem:[#allocation10 + $0xa8] sm:$0xf]
    %v3047 = vld [vmem:[#allocation10 + $0xac] sm:$0xf]
    %v3048 = vld [vmem:[#allocation10 + $0xb0] sm:$0xf]
    %v3049 = vld [vmem:[#allocation10 + $0xb4] sm:$0xf]
    %v3050 = vld [vmem:[#allocation10 + $0xb8] sm:$0xf]
    %v3051 = vld [vmem:[#allocation10 + $0xbc] sm:$0xf]
    %v3052 = vld [vmem:[#allocation10 + $0xc0] sm:$0xf]
    %v3053 = vld [vmem:[#allocation10 + $0xc4] sm:$0xf]
    %v3054 = vld [vmem:[#allocation10 + $0xc8] sm:$0xf]
    %v3055 = vld [vmem:[#allocation10 + $0xcc] sm:$0xf]
    %v3056 = vld [vmem:[#allocation10 + $0xd0] sm:$0xf]
    %v3057 = vld [vmem:[#allocation10 + $0xd4] sm:$0xf]
    %v3058 = vld [vmem:[#allocation10 + $0xd8] sm:$0xf]
    %v3059 = vld [vmem:[#allocation10 + $0xdc] sm:$0xf]
    %v3060 = vld [vmem:[#allocation10 + $0xe0] sm:$0xf]
    %v3061 = vld [vmem:[#allocation10 + $0xe4] sm:$0xf]
    %v3062 = vld [vmem:[#allocation10 + $0xe8] sm:$0xf]
    %v3063 = vld [vmem:[#allocation10 + $0xec] sm:$0xf]
    %v3064 = vld [vmem:[#allocation10 + $0xf0] sm:$0xf]
    %v3065 = vld [vmem:[#allocation10 + $0xf4] sm:$0xf]
    %v3066 = vld [vmem:[#allocation10 + $0xf8] sm:$0xf]
    %v3067 = vld [vmem:[#allocation10 + $0xfc] sm:$0xf]
    %v3068 = vld [vmem:[%s6] sm:$0x1]
    %v3070 = vlaneseq
    %v3071 = vshrl.u32 %v3070, 7
    %v3072 = vsub.s32 0, %v3071
    %v3073 = vrot.slane %v3068, %v3072
    %v3139 = vunpack.c.l.b16 %v3004
    %v3140 = vunpack.c.l.b16 %v3005
    %v3141 = vunpack.c.l.b16 %v3006
    %v3142 = vunpack.c.l.b16 %v3007
    %v3143 = vunpack.c.l.b16 %v3008
    %v3144 = vunpack.c.l.b16 %v3009
    %v3145 = vunpack.c.l.b16 %v3010
    %v3146 = vunpack.c.l.b16 %v3011
    %v3147 = vunpack.c.l.b16 %v3012
    %v3148 = vunpack.c.l.b16 %v3013
    %v3149 = vunpack.c.l.b16 %v3014
    %v3150 = vunpack.c.l.b16 %v3015
    %v3151 = vunpack.c.l.b16 %v3016
    %v3152 = vunpack.c.l.b16 %v3017
    %v3153 = vunpack.c.l.b16 %v3018
    %v3154 = vunpack.c.l.b16 %v3019
    %v3155 = vunpack.c.l.b16 %v3020
    %v3156 = vunpack.c.l.b16 %v3021
    %v3157 = vunpack.c.l.b16 %v3022
    %v3158 = vunpack.c.l.b16 %v3023
    %v3159 = vunpack.c.l.b16 %v3024
    %v3160 = vunpack.c.l.b16 %v3025
    %v3161 = vunpack.c.l.b16 %v3026
    %v3162 = vunpack.c.l.b16 %v3027
    %v3163 = vunpack.c.l.b16 %v3028
    %v3164 = vunpack.c.l.b16 %v3029
    %v3165 = vunpack.c.l.b16 %v3030
    %v3166 = vunpack.c.l.b16 %v3031
    %v3167 = vunpack.c.l.b16 %v3032
    %v3168 = vunpack.c.l.b16 %v3033
    %v3169 = vunpack.c.l.b16 %v3034
    %v3170 = vunpack.c.l.b16 %v3035
    %v3171 = vunpack.c.l.b16 %v3036
    %v3172 = vunpack.c.l.b16 %v3037
    %v3173 = vunpack.c.l.b16 %v3038
    %v3174 = vunpack.c.l.b16 %v3039
    %v3175 = vunpack.c.l.b16 %v3040
    %v3176 = vunpack.c.l.b16 %v3041
    %v3177 = vunpack.c.l.b16 %v3042
    %v3178 = vunpack.c.l.b16 %v3043
    %v3179 = vunpack.c.l.b16 %v3044
    %v3180 = vunpack.c.l.b16 %v3045
    %v3181 = vunpack.c.l.b16 %v3046
    %v3182 = vunpack.c.l.b16 %v3047
    %v3183 = vunpack.c.l.b16 %v3048
    %v3184 = vunpack.c.l.b16 %v3049
    %v3185 = vunpack.c.l.b16 %v3050
    %v3186 = vunpack.c.l.b16 %v3051
    %v3187 = vunpack.c.l.b16 %v3052
    %v3188 = vunpack.c.l.b16 %v3053
    %v3189 = vunpack.c.l.b16 %v3054
    %v3190 = vunpack.c.l.b16 %v3055
    %v3191 = vunpack.c.l.b16 %v3056
    %v3192 = vunpack.c.l.b16 %v3057
    %v3193 = vunpack.c.l.b16 %v3058
    %v3194 = vunpack.c.l.b16 %v3059
    %v3195 = vunpack.c.l.b16 %v3060
    %v3196 = vunpack.c.l.b16 %v3061
    %v3197 = vunpack.c.l.b16 %v3062
    %v3198 = vunpack.c.l.b16 %v3063
    %v3199 = vunpack.c.l.b16 %v3064
    %v3200 = vunpack.c.l.b16 %v3065
    %v3201 = vunpack.c.l.b16 %v3066
    %v3202 = vunpack.c.l.b16 %v3067
    %v3203 = vpack.c.b16 %v3140, %v3139
    %v3204 = vpack.c.b16 %v3142, %v3141
    %v3205 = vpack.c.b16 %v3144, %v3143
    %v3206 = vpack.c.b16 %v3146, %v3145
    %v3207 = vpack.c.b16 %v3148, %v3147
    %v3208 = vpack.c.b16 %v3150, %v3149
    %v3209 = vpack.c.b16 %v3152, %v3151
    %v3210 = vpack.c.b16 %v3154, %v3153
    %v3211 = vpack.c.b16 %v3156, %v3155
    %v3212 = vpack.c.b16 %v3158, %v3157
    %v3213 = vpack.c.b16 %v3160, %v3159
    %v3214 = vpack.c.b16 %v3162, %v3161
    %v3215 = vpack.c.b16 %v3164, %v3163
    %v3216 = vpack.c.b16 %v3166, %v3165
    %v3217 = vpack.c.b16 %v3168, %v3167
    %v3218 = vpack.c.b16 %v3170, %v3169
    %v3219 = vpack.c.b16 %v3172, %v3171
    %v3220 = vpack.c.b16 %v3174, %v3173
    %v3221 = vpack.c.b16 %v3176, %v3175
    %v3222 = vpack.c.b16 %v3178, %v3177
    %v3223 = vpack.c.b16 %v3180, %v3179
    %v3224 = vpack.c.b16 %v3182, %v3181
    %v3225 = vpack.c.b16 %v3184, %v3183
    %v3226 = vpack.c.b16 %v3186, %v3185
    %v3227 = vpack.c.b16 %v3188, %v3187
    %v3228 = vpack.c.b16 %v3190, %v3189
    %v3229 = vpack.c.b16 %v3192, %v3191
    %v3230 = vpack.c.b16 %v3194, %v3193
    %v3231 = vpack.c.b16 %v3196, %v3195
    %v3232 = vpack.c.b16 %v3198, %v3197
    %v3233 = vpack.c.b16 %v3200, %v3199
    %v3234 = vpack.c.b16 %v3202, %v3201
    %3267 = vmatprep.subr.bf16.mxu0 0
    %3268 = vmatpush1.bf16.msra.mxu0 %v3203
    %3269 = vmatprep.subr.bf16.mxu0 0
    %3270 = vmatpush1.bf16.msra.mxu0 %v3204
    %3271 = vmatprep.subr.bf16.mxu0 0
    %3272 = vmatpush1.bf16.msra.mxu0 %v3205
    %3273 = vmatprep.subr.bf16.mxu0 0
    %3274 = vmatpush1.bf16.msra.mxu0 %v3206
    %3275 = vmatprep.subr.bf16.mxu0 0
    %3276 = vmatpush1.bf16.msra.mxu0 %v3207
    %3277 = vmatprep.subr.bf16.mxu0 0
    %3278 = vmatpush1.bf16.msra.mxu0 %v3208
    %3279 = vmatprep.subr.bf16.mxu0 0
    %3280 = vmatpush1.bf16.msra.mxu0 %v3209
    %3281 = vmatprep.subr.bf16.mxu0 0
    %3282 = vmatpush1.bf16.msra.mxu0 %v3210
    %3283 = vmatprep.subr.bf16.mxu0 0
    %3284 = vmatpush1.bf16.msra.mxu0 %v3211
    %3285 = vmatprep.subr.bf16.mxu0 0
    %3286 = vmatpush1.bf16.msra.mxu0 %v3212
    %3287 = vmatprep.subr.bf16.mxu0 0
    %3288 = vmatpush1.bf16.msra.mxu0 %v3213
    %3289 = vmatprep.subr.bf16.mxu0 0
    %3290 = vmatpush1.bf16.msra.mxu0 %v3214
    %3291 = vmatprep.subr.bf16.mxu0 0
    %3292 = vmatpush1.bf16.msra.mxu0 %v3215
    %3293 = vmatprep.subr.bf16.mxu0 0
    %3294 = vmatpush1.bf16.msra.mxu0 %v3216
    %3295 = vmatprep.subr.bf16.mxu0 0
    %3296 = vmatpush1.bf16.msra.mxu0 %v3217
    %3297 = vmatprep.subr.bf16.mxu0 0
    %3298 = vmatpush1.bf16.msra.mxu0 %v3218
    %3299 = vmatprep.mubr.bf16.mxu0 %v3001
    %3300 = vmatmul.mubr.bf16.gmra.mrb[0].mxu0 %v3000
    %v3301 = vpop.f32.mrb[0].mxu0
    %v3302 = vadd.f32 %v3073, %v3301
    %v3303 = vpop.f32.mrb[0].mxu0
    %v3304 = vpop.f32.mrb[0].mxu0
    %v3305 = vpop.f32.mrb[0].mxu0
    %3306 = vdwg.mxu0
    %3307 = vmatprep.subr.bf16.mxu0 0
    %3308 = vmatpush1.bf16.msra.mxu0 %v3219
    %3309 = vmatprep.subr.bf16.mxu0 0
    %3310 = vmatpush1.bf16.msra.mxu0 %v3220
    %3311 = vmatprep.subr.bf16.mxu0 0
    %3312 = vmatpush1.bf16.msra.mxu0 %v3221
    %3313 = vmatprep.subr.bf16.mxu0 0
    %3314 = vmatpush1.bf16.msra.mxu0 %v3222
    %3315 = vmatprep.subr.bf16.mxu0 0
    %3316 = vmatpush1.bf16.msra.mxu0 %v3223
    %3317 = vmatprep.subr.bf16.mxu0 0
    %3318 = vmatpush1.bf16.msra.mxu0 %v3224
    %3319 = vmatprep.subr.bf16.mxu0 0
    %3320 = vmatpush1.bf16.msra.mxu0 %v3225
    %3321 = vmatprep.subr.bf16.mxu0 0
    %3322 = vmatpush1.bf16.msra.mxu0 %v3226
    %3323 = vmatprep.subr.bf16.mxu0 0
    %3324 = vmatpush1.bf16.msra.mxu0 %v3227
    %3325 = vmatprep.subr.bf16.mxu0 0
    %3326 = vmatpush1.bf16.msra.mxu0 %v3228
    %3327 = vmatprep.subr.bf16.mxu0 0
    %3328 = vmatpush1.bf16.msra.mxu0 %v3229
    %3329 = vmatprep.subr.bf16.mxu0 0
    %3330 = vmatpush1.bf16.msra.mxu0 %v3230
    %3331 = vmatprep.subr.bf16.mxu0 0
    %3332 = vmatpush1.bf16.msra.mxu0 %v3231
    %3333 = vmatprep.subr.bf16.mxu0 0
    %3334 = vmatpush1.bf16.msra.mxu0 %v3232
    %3335 = vmatprep.subr.bf16.mxu0 0
    %3336 = vmatpush1.bf16.msra.mxu0 %v3233
    %3337 = vmatprep.subr.bf16.mxu0 0
    %3338 = vmatpush1.bf16.msra.mxu0 %v3234
    %3339 = vmatprep.mubr.bf16.mxu0 %v3003
    %3340 = vmatmul.mubr.bf16.gmra.mrb[0].mxu0 %v3002
    %v3341 = vpop.f32.mrb[0].mxu0
    %v3342 = vadd.f32 %v3302, %v3341
    %v3343 = vpop.f32.mrb[0].mxu0
    %v3344 = vpop.f32.mrb[0].mxu0
    %v3345 = vpop.f32.mrb[0].mxu0
    %3346 = vdwg.mxu0
    %v3347 = vmax.f32 %v3342, 0.0
    %v3348 = vpack.c.bf16 %v3347, %v3347
    %v3349 = vld [vmem:[#allocation11] sm:$0xf]
    %v3350 = vld [vmem:[#allocation11 + $0x4] sm:$0xf]
    %v3351 = vld [vmem:[#allocation11 + $0x8] sm:$0xf]
    %v3352 = vld [vmem:[#allocation11 + $0xc] sm:$0xf]
    %v3353 = vld [vmem:[#allocation11 + $0x10] sm:$0xf]
    %v3354 = vld [vmem:[#allocation11 + $0x14] sm:$0xf]
    %v3355 = vld [vmem:[#allocation11 + $0x18] sm:$0xf]
    %v3356 = vld [vmem:[#allocation11 + $0x1c] sm:$0xf]
    %v3357 = vld [vmem:[#allocation11 + $0x20] sm:$0xf]
    %v3358 = vld [vmem:[#allocation11 + $0x24] sm:$0xf]
    %v3359 = vld [vmem:[#allocation11 + $0x28] sm:$0xf]
    %v3360 = vld [vmem:[#allocation11 + $0x2c] sm:$0xf]
    %v3361 = vld [vmem:[#allocation11 + $0x30] sm:$0xf]
    %v3362 = vld [vmem:[#allocation11 + $0x34] sm:$0xf]
    %v3363 = vld [vmem:[#allocation11 + $0x38] sm:$0xf]
    %v3364 = vld [vmem:[#allocation11 + $0x3c] sm:$0xf]
    %v3365 = vld [vmem:[%s8] sm:$0x1]
    %v3367 = vlaneseq
    %v3368 = vshrl.u32 %v3367, 7
    %v3369 = vsub.s32 0, %v3368
    %v3370 = vrot.slane %v3365, %v3369
    %v3388 = vunpack.c.l.b16 %v3349
    %v3389 = vunpack.c.l.b16 %v3350
    %v3390 = vunpack.c.l.b16 %v3351
    %v3391 = vunpack.c.l.b16 %v3352
    %v3392 = vunpack.c.l.b16 %v3353
    %v3393 = vunpack.c.l.b16 %v3354
    %v3394 = vunpack.c.l.b16 %v3355
    %v3395 = vunpack.c.l.b16 %v3356
    %v3396 = vunpack.c.l.b16 %v3357
    %v3397 = vunpack.c.l.b16 %v3358
    %v3398 = vunpack.c.l.b16 %v3359
    %v3399 = vunpack.c.l.b16 %v3360
    %v3400 = vunpack.c.l.b16 %v3361
    %v3401 = vunpack.c.l.b16 %v3362
    %v3402 = vunpack.c.l.b16 %v3363
    %v3403 = vunpack.c.l.b16 %v3364
    %v3404 = vpack.c.b16 %v3389, %v3388
    %v3405 = vpack.c.b16 %v3391, %v3390
    %v3406 = vpack.c.b16 %v3393, %v3392
    %v3407 = vpack.c.b16 %v3395, %v3394
    %v3408 = vpack.c.b16 %v3397, %v3396
    %v3409 = vpack.c.b16 %v3399, %v3398
    %v3410 = vpack.c.b16 %v3401, %v3400
    %v3411 = vpack.c.b16 %v3403, %v3402
    %3420 = vmatprep.subr.bf16.mxu0 0
    %3421 = vmatpush1.bf16.msra.mxu0 %v3404
    %3422 = vmatprep.subr.bf16.mxu0 0
    %3423 = vmatpush1.bf16.msra.mxu0 %v3405
    %3424 = vmatprep.subr.bf16.mxu0 0
    %3425 = vmatpush1.bf16.msra.mxu0 %v3406
    %3426 = vmatprep.subr.bf16.mxu0 0
    %3427 = vmatpush1.bf16.msra.mxu0 %v3407
    %3428 = vmatprep.subr.bf16.mxu0 0
    %3429 = vmatpush1.bf16.msra.mxu0 %v3408
    %3430 = vmatprep.subr.bf16.mxu0 0
    %3431 = vmatpush1.bf16.msra.mxu0 %v3409
    %3432 = vmatprep.subr.bf16.mxu0 0
    %3433 = vmatpush1.bf16.msra.mxu0 %v3410
    %3434 = vmatprep.subr.bf16.mxu0 0
    %3435 = vmatpush1.bf16.msra.mxu0 %v3411
    %3436 = vmatprep.subr.bf16.mxu0 0
    %3437 = vmatpush1.bf16.msra.mxu0 0
    %3438 = vmatprep.subr.bf16.mxu0 0
    %3439 = vmatpush1.bf16.msra.mxu0 0
    %3440 = vmatprep.subr.bf16.mxu0 0
    %3441 = vmatpush1.bf16.msra.mxu0 0
    %3442 = vmatprep.subr.bf16.mxu0 0
    %3443 = vmatpush1.bf16.msra.mxu0 0
    %3444 = vmatprep.subr.bf16.mxu0 0
    %3445 = vmatpush1.bf16.msra.mxu0 0
    %3446 = vmatprep.subr.bf16.mxu0 0
    %3447 = vmatpush1.bf16.msra.mxu0 0
    %3448 = vmatprep.subr.bf16.mxu0 0
    %3449 = vmatpush1.bf16.msra.mxu0 0
    %3450 = vmatprep.subr.bf16.mxu0 0
    %3451 = vmatpush1.bf16.msra.mxu0 0
    %3452 = vmatprep.mubr.bf16.mxu0 0
    %3453 = vmatmul.mubr.bf16.gmra.mrb[0].mxu0 %v3348
    %v3454 = vpop.f32.mrb[0].mxu0
    %v3455 = vadd.f32 %v3370, %v3454
    %v3456 = vpop.f32.mrb[0].mxu0
    %v3457 = vpop.f32.mrb[0].mxu0
    %v3458 = vpop.f32.mrb[0].mxu0
    %3459 = vdwg.mxu0
    %3460 = vst [vmem:[#allocation13] sm:$0xff] %v3455
    // Predicated region
    $region62: #{tpu_custom_call.1} parent=1 // pred_check
      _
    $region63: #{tpu_custom_call.1} parent=1 // pred_check_branch
      %3462 = sbr.rel (0) target = $region65
    $region64: #{tpu_custom_call.1} parent=1 // pred_region
      %s3464 = ssub.s32 128, 128
      %3465 = vsyncadd [#allocation4], %s3464
      %s3467 = sshll.u32 [#allocation13], 4
      %s3468 = int_to_ptr.vmem [resolvable:$true] %s3467
      %3470 = dma.vmem_to_hbm [thread:$0]  %s3468, 128, %s9, [#allocation4]
    $region65: #{tpu_custom_call.1} parent=1 // pred_fallthru
      _
    // Predicated region
    $region66: #{tpu_custom_call.1} parent=1 // pred_check
      _
    $region67: #{tpu_custom_call.1} parent=1 // pred_check_branch
      %3472 = sbr.rel (0) target = $region69
    $region68: #{tpu_custom_call.1} parent=1 // pred_region
      %3473 = dma.done [#allocation4], 128
    $region69: #{tpu_custom_call.1} parent=1 // pred_fallthru
      _
    %3474 = vsyncpa [#allocation3], 1
    %3475 = vsyncpa [#allocation6], 1
    %3476 = vsyncpa [#allocation9], 1
    %3477 = vsyncpa [#allocation12], 1
    %3478 = vsyncpa [#allocation4], 1

</llo_original>
